<compile_context>
chip_gen: v5e
topology: v5e:2x2
jax: 0.10.0
libtpu: 0.0.40
codegen_flags: <defaults>
</compile_context>

<pallas_src>
import functools
import numpy as np

import jax
import jax.numpy as jnp
from jax.experimental import pallas as pl
from jax.experimental.pallas import tpu as pltpu


# ------------------------------ model dims ----------------------------------

IN_CHANNELS = 80          # PostNet refines 80-bin mel spectrograms
OUT_CHANNELS = 80
N_HIDDEN = 256
KERNEL_SIZE = 3
LANE = 128
SUBLANE = 8


def _round_up(x, m):
    return (x + m - 1) // m * m


# ------------------------------ Pallas kernel --------------------------------

def _conv3_packed(x, w_packed, bias, t_real):
    """One Conv1d(k=3, pad=1) on a channel-last (T_pad, Cin) slab.

    w_packed: (Cin, 3*Cout) -- tap-k weight matrices (Cin, Cout) concatenated
    along the lane axis, so the whole layer is ONE wide MXU matmul.
    bias: (1, Cout).  PyTorch tap semantics: y[t] = W0·x[t-1] + W1·x[t] + W2·x[t+1] + b.
    """
    t_pad = x.shape[0]
    cout = bias.shape[-1]
    p = jnp.dot(x, w_packed, preferred_element_type=jnp.float32)   # (T_pad, 3*Cout)
    p_prev = p[:, :cout]              # tap k=0  -> contribution of x[t-1]
    p_mid = p[:, cout:2 * cout]       # tap k=1  -> contribution of x[t]
    p_next = p[:, 2 * cout:]          # tap k=2  -> contribution of x[t+1]

    t_idx = jax.lax.broadcasted_iota(jnp.int32, p_mid.shape, 0)
    # shift results along time (sublane axis) instead of shifting the input
    prev = jnp.where(t_idx == 0, 0.0, pltpu.roll(p_prev, shift=1, axis=0))
    nxt = jnp.where(t_idx >= t_real - 1, 0.0,
                    pltpu.roll(p_next, shift=t_pad - 1, axis=0))
    return prev + p_mid + nxt + bias


def _make_postnet_kernel(t_real):
    def kernel(x_ref, w1_ref, b1_ref, wm_ref, bm_ref, w5_ref, b5_ref, o_ref):
        x = x_ref[0]                                            # (T_pad, Cin_pad)
        h = _conv3_packed(x, w1_ref[...], b1_ref[...], t_real)          # cnn1
        for layer in range(wm_ref.shape[0]):                    # cnn2..cnn4 (static unroll)
            h = _conv3_packed(h, wm_ref[layer], bm_ref[layer], t_real)
        o_ref[0] = _conv3_packed(h, w5_ref[...], b5_ref[...], t_real)   # cnn5
    return kernel


def _postnet_pallas(x, w1, b1, wm, bm, w5, b5, *, t_real):
    B, t_pad, cin_pad = x.shape
    cout_pad = b5.shape[-1]
    return pl.pallas_call(
        _make_postnet_kernel(t_real),
        out_shape=jax.ShapeDtypeStruct((B, t_pad, cout_pad), jnp.float32),
        grid=(B,),
        in_specs=[
            pl.BlockSpec((1, t_pad, cin_pad), lambda b: (b, 0, 0)),
            # Weights: full-array blocks, constant index maps -> DMA'd once,
            # resident in VMEM across all grid steps (~3 MB f32 total).
            pl.BlockSpec(w1.shape, lambda b: (0, 0)),
            pl.BlockSpec(b1.shape, lambda b: (0, 0)),
            pl.BlockSpec(wm.shape, lambda b: (0, 0, 0)),
            pl.BlockSpec(bm.shape, lambda b: (0, 0, 0)),
            pl.BlockSpec(w5.shape, lambda b: (0, 0)),
            pl.BlockSpec(b5.shape, lambda b: (0, 0)),
        ],
        out_specs=pl.BlockSpec((1, t_pad, cout_pad), lambda b: (b, 0, 0)),
        compiler_params=pltpu.CompilerParams(
            dimension_semantics=("parallel",)),   # batch splits across TCs on v7x
    )(x, w1, b1, wm, bm, w5, b5)


# ------------------------------ jitted forward --------------------------------

@functools.partial(jax.jit, static_argnames=("out_channels",))
def postnet_forward(src, params, *, out_channels):
    """src: (B, C_in, T) float32 (PyTorch Conv1d layout) -> (B, out_channels, T)."""
    B, cin, T = src.shape
    cin_pad = params["w1"].shape[0]
    t_pad = _round_up(T, SUBLANE)
    x = jnp.transpose(src, (0, 2, 1))                               # (B, T, Cin)
    x = jnp.pad(x, ((0, 0), (0, t_pad - T), (0, cin_pad - cin)))    # lane/sublane pad
    y = _postnet_pallas(x, params["w1"], params["b1"], params["wm"],
                        params["bm"], params["w5"], params["b5"], t_real=T)
    return jnp.transpose(y[:, :T, :out_channels], (0, 2, 1))        # (B, Cout, T)


# ------------------------------ parameters -----------------------------------

def _pack_conv_weight(w, b, cin_pad, cout_pad):
    """PyTorch Conv1d weight (Cout, Cin, K=3) -> packed lane-dense (Cin_pad, K*Cout_pad)."""
    cout, cin, k = w.shape
    wt = jnp.transpose(w, (2, 1, 0))                                       # (K, Cin, Cout)
    wt = jnp.pad(wt, ((0, 0), (0, cin_pad - cin), (0, cout_pad - cout)))
    w_packed = jnp.concatenate([wt[i] for i in range(k)], axis=1)          # (Cin_pad, K*Cout_pad)
    b_packed = jnp.pad(b, (0, cout_pad - cout)).reshape(1, cout_pad)
    return w_packed.astype(jnp.float32), b_packed.astype(jnp.float32)


def init_torch_layout_params(key, in_channels, out_channels, n_hidden, kernel_size=3):
    """Random weights in PyTorch Conv1d layout: [(w (Cout, Cin, K), b (Cout,)), ...]."""
    dims = [(in_channels, n_hidden), (n_hidden, n_hidden), (n_hidden, n_hidden),
            (n_hidden, n_hidden), (n_hidden, out_channels)]
    layers = []
    for cin, cout in dims:
        key, kw, kb = jax.random.split(key, 3)
        scale = 1.0 / np.sqrt(cin * kernel_size)
        w = scale * jax.random.normal(kw, (cout, cin, kernel_size), jnp.float32)
        b = 0.1 * jax.random.normal(kb, (cout,), jnp.float32)
        layers.append((w, b))
    return layers


def pack_params(torch_layers):
    """Pre-transpose / pad / pack all weights ONCE (no transposes at call time)."""
    (w1, b1), (w2, b2), (w3, b3), (w4, b4), (w5, b5) = torch_layers
    cin = w1.shape[1]
    n_hidden = w1.shape[0]
    cout = w5.shape[0]
    cin_pad = _round_up(cin, LANE)
    hid_pad = _round_up(n_hidden, LANE)
    cout_pad = _round_up(cout, LANE)
    pw1, pb1 = _pack_conv_weight(w1, b1, cin_pad, hid_pad)
    mids = [_pack_conv_weight(w, b, hid_pad, hid_pad)
            for (w, b) in ((w2, b2), (w3, b3), (w4, b4))]
    wm = jnp.stack([m[0] for m in mids])                  # (3, hid_pad, 3*hid_pad)
    bm = jnp.stack([m[1] for m in mids])                  # (3, 1, hid_pad)
    pw5, pb5 = _pack_conv_weight(w5, b5, hid_pad, cout_pad)
    return {"w1": pw1, "b1": pb1, "wm": wm, "bm": bm, "w5": pw5, "b5": pb5}


# ------------------------------ numpy reference -------------------------------

def postnet_reference_np(src, torch_layers):
    """Float64 reference of the PyTorch module (cross-correlation, padding=1)."""
    x = np.asarray(src, np.float64)
    for w, b in torch_layers:
        w = np.asarray(w, np.float64)
        b = np.asarray(b, np.float64)
        _, _, T = x.shape
        xp = np.pad(x, ((0, 0), (0, 0), (1, 1)))
        y = np.zeros((x.shape[0], w.shape[0], T), np.float64)
        for k in range(w.shape[2]):
            y += np.einsum("oi,bit->bot", w[:, :, k], xp[:, :, k:k + T])
        y += b[None, :, None]
        x = y
    return x


# ---------------------------------- main --------------------------------------

if __name__ == "__main__":
    key = jax.random.PRNGKey(0)
    k_src, k_par = jax.random.split(key)

    B, T = 2, 16
    src = jax.random.normal(k_src, (B, IN_CHANNELS, T), jnp.float32)

    torch_layers = init_torch_layout_params(k_par, IN_CHANNELS, OUT_CHANNELS,
                                            N_HIDDEN, KERNEL_SIZE)
    params = pack_params(torch_layers)

    out = postnet_forward(src, params, out_channels=OUT_CHANNELS)
    out = jax.block_until_ready(out)

    assert out.shape == (B, OUT_CHANNELS, T)
    assert bool(jnp.all(jnp.isfinite(out)))

    ref = postnet_reference_np(np.asarray(src), torch_layers)
    np.testing.assert_allclose(np.asarray(out), ref, rtol=2e-2, atol=2e-3)

    print("KERNEL_OK")
</pallas_src>

<mosaic_0001>
module attributes {stable_mosaic.version = 11 : i64} {
  func.func @kernel(%arg0: i32, %arg1: memref<1x16x128xf32, #tpu.memory_space<vmem>>, %arg2: memref<128x768xf32, #tpu.memory_space<vmem>>, %arg3: memref<1x256xf32, #tpu.memory_space<vmem>>, %arg4: memref<3x256x768xf32, #tpu.memory_space<vmem>>, %arg5: memref<3x1x256xf32, #tpu.memory_space<vmem>>, %arg6: memref<256x384xf32, #tpu.memory_space<vmem>>, %arg7: memref<1x128xf32, #tpu.memory_space<vmem>>, %arg8: memref<1x16x128xf32, #tpu.memory_space<vmem>>) attributes {dimension_semantics = [#tpu.dimension_semantics<parallel>], iteration_bounds = array<i64: 2>, scalar_prefetch = 0 : i64, scratch_operands = 0 : i64, tpu.core_type = #tpu.core_type<tc>, window_params = [{transform_indices = @transform_0, window_bounds = array<i64: 1, 16, 128>}, {pipeline_mode = #tpu.pipeline_mode<synchronous>, transform_indices = @transform_1, window_bounds = array<i64: 128, 768>}, {pipeline_mode = #tpu.pipeline_mode<synchronous>, transform_indices = @transform_2, window_bounds = array<i64: 1, 256>}, {pipeline_mode = #tpu.pipeline_mode<synchronous>, transform_indices = @transform_3, window_bounds = array<i64: 3, 256, 768>}, {pipeline_mode = #tpu.pipeline_mode<synchronous>, transform_indices = @transform_4, window_bounds = array<i64: 3, 1, 256>}, {pipeline_mode = #tpu.pipeline_mode<synchronous>, transform_indices = @transform_5, window_bounds = array<i64: 256, 384>}, {pipeline_mode = #tpu.pipeline_mode<synchronous>, transform_indices = @transform_6, window_bounds = array<i64: 1, 128>}, {transform_indices = @transform_7, window_bounds = array<i64: 1, 16, 128>}]} {
    %c0 = arith.constant 0 : index
    %c0_0 = arith.constant 0 : index
    %c0_1 = arith.constant 0 : index
    %0 = vector.load %arg1[%c0, %c0_0, %c0_1] : memref<1x16x128xf32, #tpu.memory_space<vmem>>, vector<1x16x128xf32>
    %1 = vector.shape_cast %0 : vector<1x16x128xf32> to vector<16x128xf32>
    %c0_2 = arith.constant 0 : index
    %c0_3 = arith.constant 0 : index
    %2 = vector.load %arg2[%c0_2, %c0_3] : memref<128x768xf32, #tpu.memory_space<vmem>>, vector<128x768xf32>
    %c0_4 = arith.constant 0 : index
    %c0_5 = arith.constant 0 : index
    %3 = vector.load %arg3[%c0_4, %c0_5] : memref<1x256xf32, #tpu.memory_space<vmem>>, vector<1x256xf32>
    %cst = arith.constant dense<0.000000e+00> : vector<16x768xf32>
    %4 = tpu.matmul %1, %2, %cst {dimension_numbers = #tpu.dot_dimension_numbers<[1], [0], [0], [1], [0, 0, 1, 1], [], []>} : vector<16x128xf32>, vector<128x768xf32>, vector<16x768xf32> -> vector<16x768xf32>
    %5 = vector.extract_strided_slice %4 {offsets = [0, 0], sizes = [16, 256], strides = [1, 1]} : vector<16x768xf32> to vector<16x256xf32>
    %6 = vector.extract_strided_slice %4 {offsets = [0, 256], sizes = [16, 256], strides = [1, 1]} : vector<16x768xf32> to vector<16x256xf32>
    %7 = vector.extract_strided_slice %4 {offsets = [0, 512], sizes = [16, 256], strides = [1, 1]} : vector<16x768xf32> to vector<16x256xf32>
    %8 = tpu.iota {dimensions = array<i32: 0>} : vector<16x256xi32>
    %c0_i32 = arith.constant 0 : i32
    %9 = vector.broadcast %c0_i32 : i32 to vector<16x256xi32>
    %10 = arith.cmpi eq, %8, %9 : vector<16x256xi32>
    %c1_i32 = arith.constant 1 : i32
    %11 = tpu.dynamic_rotate %5 by %c1_i32 dim 0 : vector<16x256xf32>, i32 -> vector<16x256xf32>
    %cst_6 = arith.constant 0.000000e+00 : f32
    %12 = vector.broadcast %cst_6 : f32 to vector<16x256xf32>
    %13 = arith.select %10, %12, %11 : vector<16x256xi1>, vector<16x256xf32>
    %c15_i32 = arith.constant 15 : i32
    %14 = vector.broadcast %c15_i32 : i32 to vector<16x256xi32>
    %15 = arith.cmpi sge, %8, %14 : vector<16x256xi32>
    %c15_i32_7 = arith.constant 15 : i32
    %16 = tpu.dynamic_rotate %7 by %c15_i32_7 dim 0 : vector<16x256xf32>, i32 -> vector<16x256xf32>
    %cst_8 = arith.constant 0.000000e+00 : f32
    %17 = vector.broadcast %cst_8 : f32 to vector<16x256xf32>
    %18 = arith.select %15, %17, %16 : vector<16x256xi1>, vector<16x256xf32>
    %19 = arith.addf %13, %6 : vector<16x256xf32>
    %20 = arith.addf %19, %18 : vector<16x256xf32>
    %21 = vector.broadcast %3 : vector<1x256xf32> to vector<16x256xf32>
    %22 = arith.addf %20, %21 : vector<16x256xf32>
    %c0_9 = arith.constant 0 : index
    %c0_10 = arith.constant 0 : index
    %c0_11 = arith.constant 0 : index
    %23 = vector.load %arg4[%c0_9, %c0_10, %c0_11] : memref<3x256x768xf32, #tpu.memory_space<vmem>>, vector<1x256x768xf32>
    %24 = vector.shape_cast %23 : vector<1x256x768xf32> to vector<256x768xf32>
    %c0_12 = arith.constant 0 : index
    %c0_13 = arith.constant 0 : index
    %c0_14 = arith.constant 0 : index
    %25 = vector.load %arg5[%c0_12, %c0_13, %c0_14] : memref<3x1x256xf32, #tpu.memory_space<vmem>>, vector<1x1x256xf32>
    %26 = vector.shape_cast %25 : vector<1x1x256xf32> to vector<1x256xf32>
    %cst_15 = arith.constant dense<0.000000e+00> : vector<16x768xf32>
    %27 = tpu.matmul %22, %24, %cst_15 {dimension_numbers = #tpu.dot_dimension_numbers<[1], [0], [0], [1], [0, 0, 1, 1], [], []>} : vector<16x256xf32>, vector<256x768xf32>, vector<16x768xf32> -> vector<16x768xf32>
    %28 = vector.extract_strided_slice %27 {offsets = [0, 0], sizes = [16, 256], strides = [1, 1]} : vector<16x768xf32> to vector<16x256xf32>
    %29 = vector.extract_strided_slice %27 {offsets = [0, 256], sizes = [16, 256], strides = [1, 1]} : vector<16x768xf32> to vector<16x256xf32>
    %30 = vector.extract_strided_slice %27 {offsets = [0, 512], sizes = [16, 256], strides = [1, 1]} : vector<16x768xf32> to vector<16x256xf32>
    %31 = tpu.iota {dimensions = array<i32: 0>} : vector<16x256xi32>
    %c0_i32_16 = arith.constant 0 : i32
    %32 = vector.broadcast %c0_i32_16 : i32 to vector<16x256xi32>
    %33 = arith.cmpi eq, %31, %32 : vector<16x256xi32>
    %c1_i32_17 = arith.constant 1 : i32
    %34 = tpu.dynamic_rotate %28 by %c1_i32_17 dim 0 : vector<16x256xf32>, i32 -> vector<16x256xf32>
    %cst_18 = arith.constant 0.000000e+00 : f32
    %35 = vector.broadcast %cst_18 : f32 to vector<16x256xf32>
    %36 = arith.select %33, %35, %34 : vector<16x256xi1>, vector<16x256xf32>
    %c15_i32_19 = arith.constant 15 : i32
    %37 = vector.broadcast %c15_i32_19 : i32 to vector<16x256xi32>
    %38 = arith.cmpi sge, %31, %37 : vector<16x256xi32>
    %c15_i32_20 = arith.constant 15 : i32
    %39 = tpu.dynamic_rotate %30 by %c15_i32_20 dim 0 : vector<16x256xf32>, i32 -> vector<16x256xf32>
    %cst_21 = arith.constant 0.000000e+00 : f32
    %40 = vector.broadcast %cst_21 : f32 to vector<16x256xf32>
    %41 = arith.select %38, %40, %39 : vector<16x256xi1>, vector<16x256xf32>
    %42 = arith.addf %36, %29 : vector<16x256xf32>
    %43 = arith.addf %42, %41 : vector<16x256xf32>
    %44 = vector.broadcast %26 : vector<1x256xf32> to vector<16x256xf32>
    %45 = arith.addf %43, %44 : vector<16x256xf32>
    %c1 = arith.constant 1 : index
    %c0_22 = arith.constant 0 : index
    %c0_23 = arith.constant 0 : index
    %46 = vector.load %arg4[%c1, %c0_22, %c0_23] : memref<3x256x768xf32, #tpu.memory_space<vmem>>, vector<1x256x768xf32>
    %47 = vector.shape_cast %46 : vector<1x256x768xf32> to vector<256x768xf32>
    %c1_24 = arith.constant 1 : index
    %c0_25 = arith.constant 0 : index
    %c0_26 = arith.constant 0 : index
    %48 = vector.load %arg5[%c1_24, %c0_25, %c0_26] : memref<3x1x256xf32, #tpu.memory_space<vmem>>, vector<1x1x256xf32>
    %49 = vector.shape_cast %48 : vector<1x1x256xf32> to vector<1x256xf32>
    %cst_27 = arith.constant dense<0.000000e+00> : vector<16x768xf32>
    %50 = tpu.matmul %45, %47, %cst_27 {dimension_numbers = #tpu.dot_dimension_numbers<[1], [0], [0], [1], [0, 0, 1, 1], [], []>} : vector<16x256xf32>, vector<256x768xf32>, vector<16x768xf32> -> vector<16x768xf32>
    %51 = vector.extract_strided_slice %50 {offsets = [0, 0], sizes = [16, 256], strides = [1, 1]} : vector<16x768xf32> to vector<16x256xf32>
    %52 = vector.extract_strided_slice %50 {offsets = [0, 256], sizes = [16, 256], strides = [1, 1]} : vector<16x768xf32> to vector<16x256xf32>
    %53 = vector.extract_strided_slice %50 {offsets = [0, 512], sizes = [16, 256], strides = [1, 1]} : vector<16x768xf32> to vector<16x256xf32>
    %54 = tpu.iota {dimensions = array<i32: 0>} : vector<16x256xi32>
    %c0_i32_28 = arith.constant 0 : i32
    %55 = vector.broadcast %c0_i32_28 : i32 to vector<16x256xi32>
    %56 = arith.cmpi eq, %54, %55 : vector<16x256xi32>
    %c1_i32_29 = arith.constant 1 : i32
    %57 = tpu.dynamic_rotate %51 by %c1_i32_29 dim 0 : vector<16x256xf32>, i32 -> vector<16x256xf32>
    %cst_30 = arith.constant 0.000000e+00 : f32
    %58 = vector.broadcast %cst_30 : f32 to vector<16x256xf32>
    %59 = arith.select %56, %58, %57 : vector<16x256xi1>, vector<16x256xf32>
    %c15_i32_31 = arith.constant 15 : i32
    %60 = vector.broadcast %c15_i32_31 : i32 to vector<16x256xi32>
    %61 = arith.cmpi sge, %54, %60 : vector<16x256xi32>
    %c15_i32_32 = arith.constant 15 : i32
    %62 = tpu.dynamic_rotate %53 by %c15_i32_32 dim 0 : vector<16x256xf32>, i32 -> vector<16x256xf32>
    %cst_33 = arith.constant 0.000000e+00 : f32
    %63 = vector.broadcast %cst_33 : f32 to vector<16x256xf32>
    %64 = arith.select %61, %63, %62 : vector<16x256xi1>, vector<16x256xf32>
    %65 = arith.addf %59, %52 : vector<16x256xf32>
    %66 = arith.addf %65, %64 : vector<16x256xf32>
    %67 = vector.broadcast %49 : vector<1x256xf32> to vector<16x256xf32>
    %68 = arith.addf %66, %67 : vector<16x256xf32>
    %c2 = arith.constant 2 : index
    %c0_34 = arith.constant 0 : index
    %c0_35 = arith.constant 0 : index
    %69 = vector.load %arg4[%c2, %c0_34, %c0_35] : memref<3x256x768xf32, #tpu.memory_space<vmem>>, vector<1x256x768xf32>
    %70 = vector.shape_cast %69 : vector<1x256x768xf32> to vector<256x768xf32>
    %c2_36 = arith.constant 2 : index
    %c0_37 = arith.constant 0 : index
    %c0_38 = arith.constant 0 : index
    %71 = vector.load %arg5[%c2_36, %c0_37, %c0_38] : memref<3x1x256xf32, #tpu.memory_space<vmem>>, vector<1x1x256xf32>
    %72 = vector.shape_cast %71 : vector<1x1x256xf32> to vector<1x256xf32>
    %cst_39 = arith.constant dense<0.000000e+00> : vector<16x768xf32>
    %73 = tpu.matmul %68, %70, %cst_39 {dimension_numbers = #tpu.dot_dimension_numbers<[1], [0], [0], [1], [0, 0, 1, 1], [], []>} : vector<16x256xf32>, vector<256x768xf32>, vector<16x768xf32> -> vector<16x768xf32>
    %74 = vector.extract_strided_slice %73 {offsets = [0, 0], sizes = [16, 256], strides = [1, 1]} : vector<16x768xf32> to vector<16x256xf32>
    %75 = vector.extract_strided_slice %73 {offsets = [0, 256], sizes = [16, 256], strides = [1, 1]} : vector<16x768xf32> to vector<16x256xf32>
    %76 = vector.extract_strided_slice %73 {offsets = [0, 512], sizes = [16, 256], strides = [1, 1]} : vector<16x768xf32> to vector<16x256xf32>
    %77 = tpu.iota {dimensions = array<i32: 0>} : vector<16x256xi32>
    %c0_i32_40 = arith.constant 0 : i32
    %78 = vector.broadcast %c0_i32_40 : i32 to vector<16x256xi32>
    %79 = arith.cmpi eq, %77, %78 : vector<16x256xi32>
    %c1_i32_41 = arith.constant 1 : i32
    %80 = tpu.dynamic_rotate %74 by %c1_i32_41 dim 0 : vector<16x256xf32>, i32 -> vector<16x256xf32>
    %cst_42 = arith.constant 0.000000e+00 : f32
    %81 = vector.broadcast %cst_42 : f32 to vector<16x256xf32>
    %82 = arith.select %79, %81, %80 : vector<16x256xi1>, vector<16x256xf32>
    %c15_i32_43 = arith.constant 15 : i32
    %83 = vector.broadcast %c15_i32_43 : i32 to vector<16x256xi32>
    %84 = arith.cmpi sge, %77, %83 : vector<16x256xi32>
    %c15_i32_44 = arith.constant 15 : i32
    %85 = tpu.dynamic_rotate %76 by %c15_i32_44 dim 0 : vector<16x256xf32>, i32 -> vector<16x256xf32>
    %cst_45 = arith.constant 0.000000e+00 : f32
    %86 = vector.broadcast %cst_45 : f32 to vector<16x256xf32>
    %87 = arith.select %84, %86, %85 : vector<16x256xi1>, vector<16x256xf32>
    %88 = arith.addf %82, %75 : vector<16x256xf32>
    %89 = arith.addf %88, %87 : vector<16x256xf32>
    %90 = vector.broadcast %72 : vector<1x256xf32> to vector<16x256xf32>
    %91 = arith.addf %89, %90 : vector<16x256xf32>
    %c0_46 = arith.constant 0 : index
    %c0_47 = arith.constant 0 : index
    %92 = vector.load %arg6[%c0_46, %c0_47] : memref<256x384xf32, #tpu.memory_space<vmem>>, vector<256x384xf32>
    %c0_48 = arith.constant 0 : index
    %c0_49 = arith.constant 0 : index
    %93 = vector.load %arg7[%c0_48, %c0_49] : memref<1x128xf32, #tpu.memory_space<vmem>>, vector<1x128xf32>
    %cst_50 = arith.constant dense<0.000000e+00> : vector<16x384xf32>
    %94 = tpu.matmul %91, %92, %cst_50 {dimension_numbers = #tpu.dot_dimension_numbers<[1], [0], [0], [1], [0, 0, 1, 1], [], []>} : vector<16x256xf32>, vector<256x384xf32>, vector<16x384xf32> -> vector<16x384xf32>
    %95 = vector.extract_strided_slice %94 {offsets = [0, 0], sizes = [16, 128], strides = [1, 1]} : vector<16x384xf32> to vector<16x128xf32>
    %96 = vector.extract_strided_slice %94 {offsets = [0, 128], sizes = [16, 128], strides = [1, 1]} : vector<16x384xf32> to vector<16x128xf32>
    %97 = vector.extract_strided_slice %94 {offsets = [0, 256], sizes = [16, 128], strides = [1, 1]} : vector<16x384xf32> to vector<16x128xf32>
    %98 = tpu.iota {dimensions = array<i32: 0>} : vector<16x128xi32>
    %c0_i32_51 = arith.constant 0 : i32
    %99 = vector.broadcast %c0_i32_51 : i32 to vector<16x128xi32>
    %100 = arith.cmpi eq, %98, %99 : vector<16x128xi32>
    %c1_i32_52 = arith.constant 1 : i32
    %101 = tpu.dynamic_rotate %95 by %c1_i32_52 dim 0 : vector<16x128xf32>, i32 -> vector<16x128xf32>
    %cst_53 = arith.constant 0.000000e+00 : f32
    %102 = vector.broadcast %cst_53 : f32 to vector<16x128xf32>
    %103 = arith.select %100, %102, %101 : vector<16x128xi1>, vector<16x128xf32>
    %c15_i32_54 = arith.constant 15 : i32
    %104 = vector.broadcast %c15_i32_54 : i32 to vector<16x128xi32>
    %105 = arith.cmpi sge, %98, %104 : vector<16x128xi32>
    %c15_i32_55 = arith.constant 15 : i32
    %106 = tpu.dynamic_rotate %97 by %c15_i32_55 dim 0 : vector<16x128xf32>, i32 -> vector<16x128xf32>
    %cst_56 = arith.constant 0.000000e+00 : f32
    %107 = vector.broadcast %cst_56 : f32 to vector<16x128xf32>
    %108 = arith.select %105, %107, %106 : vector<16x128xi1>, vector<16x128xf32>
    %109 = arith.addf %103, %96 : vector<16x128xf32>
    %110 = arith.addf %109, %108 : vector<16x128xf32>
    %111 = vector.broadcast %93 : vector<1x128xf32> to vector<16x128xf32>
    %112 = arith.addf %110, %111 : vector<16x128xf32>
    %c0_57 = arith.constant 0 : index
    %c0_58 = arith.constant 0 : index
    %c0_59 = arith.constant 0 : index
    %113 = vector.load %arg8[%c0_57, %c0_58, %c0_59] : memref<1x16x128xf32, #tpu.memory_space<vmem>>, vector<1x16x128xf32>
    %114 = vector.shape_cast %113 : vector<1x16x128xf32> to vector<16x128xf32>
    %115 = vector.shape_cast %112 : vector<16x128xf32> to vector<1x16x128xf32>
    tpu.vector_store %arg8[%c0_57, %c0_58, %c0_59], %115 {strides = array<i32>} : memref<1x16x128xf32, #tpu.memory_space<vmem>>, vector<1x16x128xf32>,
    return
  }
  func.func @transform_0(%arg0: i32) -> (i32, i32, i32) {
    %c0_i32 = arith.constant 0 : i32
    %c0_i32_0 = arith.constant 0 : i32
    %c0_i32_1 = arith.constant 0 : i32
    return %arg0, %c0_i32, %c0_i32_0 : i32, i32, i32
  }
  func.func @transform_1(%arg0: i32) -> (i32, i32) {
    %c0_i32 = arith.constant 0 : i32
    %c0_i32_0 = arith.constant 0 : i32
    %c0_i32_1 = arith.constant 0 : i32
    return %c0_i32, %c0_i32_0 : i32, i32
  }
  func.func @transform_2(%arg0: i32) -> (i32, i32) {
    %c0_i32 = arith.constant 0 : i32
    %c0_i32_0 = arith.constant 0 : i32
    %c0_i32_1 = arith.constant 0 : i32
    return %c0_i32, %c0_i32_0 : i32, i32
  }
  func.func @transform_3(%arg0: i32) -> (i32, i32, i32) {
    %c0_i32 = arith.constant 0 : i32
    %c0_i32_0 = arith.constant 0 : i32
    %c0_i32_1 = arith.constant 0 : i32
    %c0_i32_2 = arith.constant 0 : i32
    return %c0_i32, %c0_i32_0, %c0_i32_1 : i32, i32, i32
  }
  func.func @transform_4(%arg0: i32) -> (i32, i32, i32) {
    %c0_i32 = arith.constant 0 : i32
    %c0_i32_0 = arith.constant 0 : i32
    %c0_i32_1 = arith.constant 0 : i32
    %c0_i32_2 = arith.constant 0 : i32
    return %c0_i32, %c0_i32_0, %c0_i32_1 : i32, i32, i32
  }
  func.func @transform_5(%arg0: i32) -> (i32, i32) {
    %c0_i32 = arith.constant 0 : i32
    %c0_i32_0 = arith.constant 0 : i32
    %c0_i32_1 = arith.constant 0 : i32
    return %c0_i32, %c0_i32_0 : i32, i32
  }
  func.func @transform_6(%arg0: i32) -> (i32, i32) {
    %c0_i32 = arith.constant 0 : i32
    %c0_i32_0 = arith.constant 0 : i32
    %c0_i32_1 = arith.constant 0 : i32
    return %c0_i32, %c0_i32_0 : i32, i32
  }
  func.func @transform_7(%arg0: i32) -> (i32, i32, i32) {
    %c0_i32 = arith.constant 0 : i32
    %c0_i32_0 = arith.constant 0 : i32
    %c0_i32_1 = arith.constant 0 : i32
    return %arg0, %c0_i32, %c0_i32_0 : i32, i32, i32
  }
}

</mosaic_0001>

<llo_original>
// kernel: postnet_forward.1
$region0: #{postnet_forward.1}
  #allocation0 [shape = 'u32[]', space=smem, size = 0x4, offset = 0x4, fixed_abs, tag = 'smem constant byte address 0x4 - core index']
  #allocation1 [shape = 'u32[72,128]{1,0:T(1,128)}', space=vmem, size = 0x9000, scoped, tag = 'internal scratch']
  %s0 = inlined_call_operand.vmem [shape: f32[2,16,128], index: 0, kind: input, shape index: {}]
  %s1 = inlined_call_operand.hbm [shape: f32[128,768], index: 1, kind: input, shape index: {}]
  %s2 = inlined_call_operand.hbm [shape: f32[1,256], index: 2, kind: input, shape index: {}]
  %s3 = inlined_call_operand.hbm [shape: f32[3,256,768], index: 3, kind: input, shape index: {}]
  %s4 = inlined_call_operand.hbm [shape: f32[3,1,256], index: 4, kind: input, shape index: {}]
  %s5 = inlined_call_operand.hbm [shape: f32[256,384], index: 5, kind: input, shape index: {}]
  %s6 = inlined_call_operand.hbm [shape: f32[1,128], index: 6, kind: input, shape index: {}]
  %s7 = inlined_call_operand.vmem [shape: f32[2,16,128], index: 7, kind: output, shape index: {}]
  %s8 = sld [smem:[#allocation0]]
  $region85: #{postnet_forward.1} parent=0
    _
  %s10 = ssub.s32 1, %s8
  %s11 = scalar_select 0, %s10, %s8
  $region1: #{postnet_forward.1} parent=0
    #allocation2 [shape = 'u8[393216]{0}', space=vmem, size = 0x60000, scoped, tag = 'input window, operand 1, single buffered']
    #allocation3 [shape = 's32[2]{0}', space=sflag, size = 0x8, scoped, tag = 'scoped memory for postnet_forward.1']
    #allocation4 [shape = 'u8[1024]{0}', space=vmem, size = 0x400, scoped, tag = 'input window, operand 2, single buffered']
    #allocation5 [shape = 's32[1]{0}', space=sflag, size = 0x4, scoped, tag = 'scoped memory for postnet_forward.1']
    #allocation6 [shape = 'u8[2359296]{0}', space=vmem, size = 0x240000, scoped, tag = 'input window, operand 3, single buffered']
    #allocation7 [shape = 'u8[3072]{0}', space=vmem, size = 0xc00, scoped, tag = 'input window, operand 4, single buffered']
    #allocation8 [shape = 's32[1]{0}', space=sflag, size = 0x4, scoped, tag = 'scoped memory for postnet_forward.1']
    #allocation9 [shape = 'u8[393216]{0}', space=vmem, size = 0x60000, scoped, tag = 'input window, operand 5, single buffered']
    #allocation10 [shape = 'u8[512]{0}', space=vmem, size = 0x400, scoped, tag = 'input window, operand 6, single buffered']
    #allocation11 [shape = 's32[1]{0}', space=sflag, size = 0x4, scoped, tag = 'scoped memory for postnet_forward.1']
    %12 = vsyncpa [#allocation3], 0
    %13 = vsyncpa [#allocation5], 0
    %14 = vsyncpa [#allocation8], 0
    %15 = vsyncpa [#allocation11], 0
    loop: start=0, step=1, limit=4
    $region2: #{postnet_forward.1} parent=1 // loop_pre_header
      _
    $region3: #{postnet_forward.1} parent=1 // loop_header
      %s17 = sphi 0, %s21
      %p18 = scmp.ge.s32.totalorder %s17, 4
      %s27 = sphi 0, %s29
      %s30 = sphi 0, %s27
      %s31 = sphi 0, %s30
      %s47 = sphi 0, %s31
      %s51 = sphi 0, %s51
      %s53 = sphi 0, %s51
      %s54 = sphi 0, %s53
      %s68 = sphi 0, %s54
      %s72 = sphi 0, %s72
      %s74 = sphi 0, %s72
      %s75 = sphi 0, %s74
      %s89 = sphi 0, %s75
      %s93 = sphi 0, %s93
      %s95 = sphi 0, %s93
      %s96 = sphi 0, %s95
      %s110 = sphi 0, %s96
      %s114 = sphi 0, %s114
      %s116 = sphi 0, %s114
      %s117 = sphi 0, %s116
      %s131 = sphi 0, %s117
      %s135 = sphi 0, %s135
      %s137 = sphi 0, %s135
      %s138 = sphi 0, %s137
      %s152 = sphi 0, %s138
      %s156 = sphi 0, %s156
      %s158 = sphi 0, %s156
      %s159 = sphi 0, %s158
      %s173 = sphi 0, %s159
      %s179 = sphi 0, %s181
      %s182 = sphi 0, %s179
      %s183 = sphi 0, %s182
      %s199 = sphi 0, %s183
    $region4: #{postnet_forward.1} parent=1 // loop_header_branch
      %20 = sbr.rel (%p18) target = $region8
    $region5: #{postnet_forward.1} parent=1 // loop_body
      %s22 = ssub.s32 %s17, 1
      %s23 = ssub.s32 %s17, 2
      %s24 = sadd.s32 %s17, 1
      %s25 = ssub.s32 %s17, %s24
      %p26 = scmp.eq.s32.totalorder %s25, 0
      %s28 = sadd.s32 %s27, 1
      %s29 = scalar_select %p26, %s27, %s28
      %p32 = pneg %p26
      %p33 = scmp.eq.s32.totalorder %s17, 1
      %p34 = por %p32, %p33
      %p35 = scmp.ne.s32.totalorder %s27, %s30
      %p36 = scmp.eq.s32.totalorder %s17, 0
      %p37 = por %p35, %p36
      %p38 = scmp.ne.s32.totalorder %s27, %s30
      %p39 = scmp.eq.s32.totalorder %s22, 1
      %p40 = por %p38, %p39
      %p41 = scmp.ne.s32.totalorder %s30, %s31
      %p42 = scmp.eq.s32.totalorder %s22, 0
      %p43 = por %p41, %p42
      %p44 = scmp.ne.s32.totalorder %s30, %s31
      %p45 = scmp.eq.s32.totalorder %s23, 1
      %p46 = por %p44, %p45
      %p48 = scmp.ne.s32.totalorder %s31, %s47
      %p49 = scmp.eq.s32.totalorder %s23, 0
      %p50 = por %p48, %p49
      %s52 = sadd.s32 %s51, 1
      %p55 = scmp.eq.s32.totalorder %s17, 1
      %p56 = scmp.ne.s32.totalorder %s51, %s53
      %p57 = scmp.eq.s32.totalorder %s17, 0
      %p58 = por %p56, %p57
      %p59 = scmp.ne.s32.totalorder %s51, %s53
      %p60 = scmp.eq.s32.totalorder %s22, 1
      %p61 = por %p59, %p60
      %p62 = scmp.ne.s32.totalorder %s53, %s54
      %p63 = scmp.eq.s32.totalorder %s22, 0
      %p64 = por %p62, %p63
      %p65 = scmp.ne.s32.totalorder %s53, %s54
      %p66 = scmp.eq.s32.totalorder %s23, 1
      %p67 = por %p65, %p66
      %p69 = scmp.ne.s32.totalorder %s54, %s68
      %p70 = scmp.eq.s32.totalorder %s23, 0
      %p71 = por %p69, %p70
      %s73 = sadd.s32 %s72, 1
      %p76 = scmp.eq.s32.totalorder %s17, 1
      %p77 = scmp.ne.s32.totalorder %s72, %s74
      %p78 = scmp.eq.s32.totalorder %s17, 0
      %p79 = por %p77, %p78
      %p80 = scmp.ne.s32.totalorder %s72, %s74
      %p81 = scmp.eq.s32.totalorder %s22, 1
      %p82 = por %p80, %p81
      %p83 = scmp.ne.s32.totalorder %s74, %s75
      %p84 = scmp.eq.s32.totalorder %s22, 0
      %p85 = por %p83, %p84
      %p86 = scmp.ne.s32.totalorder %s74, %s75
      %p87 = scmp.eq.s32.totalorder %s23, 1
      %p88 = por %p86, %p87
      %p90 = scmp.ne.s32.totalorder %s75, %s89
      %p91 = scmp.eq.s32.totalorder %s23, 0
      %p92 = por %p90, %p91
      %s94 = sadd.s32 %s93, 1
      %p97 = scmp.eq.s32.totalorder %s17, 1
      %p98 = scmp.ne.s32.totalorder %s93, %s95
      %p99 = scmp.eq.s32.totalorder %s17, 0
      %p100 = por %p98, %p99
      %p101 = scmp.ne.s32.totalorder %s93, %s95
      %p102 = scmp.eq.s32.totalorder %s22, 1
      %p103 = por %p101, %p102
      %p104 = scmp.ne.s32.totalorder %s95, %s96
      %p105 = scmp.eq.s32.totalorder %s22, 0
      %p106 = por %p104, %p105
      %p107 = scmp.ne.s32.totalorder %s95, %s96
      %p108 = scmp.eq.s32.totalorder %s23, 1
      %p109 = por %p107, %p108
      %p111 = scmp.ne.s32.totalorder %s96, %s110
      %p112 = scmp.eq.s32.totalorder %s23, 0
      %p113 = por %p111, %p112
      %s115 = sadd.s32 %s114, 1
      %p118 = scmp.eq.s32.totalorder %s17, 1
      %p119 = scmp.ne.s32.totalorder %s114, %s116
      %p120 = scmp.eq.s32.totalorder %s17, 0
      %p121 = por %p119, %p120
      %p122 = scmp.ne.s32.totalorder %s114, %s116
      %p123 = scmp.eq.s32.totalorder %s22, 1
      %p124 = por %p122, %p123
      %p125 = scmp.ne.s32.totalorder %s116, %s117
      %p126 = scmp.eq.s32.totalorder %s22, 0
      %p127 = por %p125, %p126
      %p128 = scmp.ne.s32.totalorder %s116, %s117
      %p129 = scmp.eq.s32.totalorder %s23, 1
      %p130 = por %p128, %p129
      %p132 = scmp.ne.s32.totalorder %s117, %s131
      %p133 = scmp.eq.s32.totalorder %s23, 0
      %p134 = por %p132, %p133
      %s136 = sadd.s32 %s135, 1
      %p139 = scmp.eq.s32.totalorder %s17, 1
      %p140 = scmp.ne.s32.totalorder %s135, %s137
      %p141 = scmp.eq.s32.totalorder %s17, 0
      %p142 = por %p140, %p141
      %p143 = scmp.ne.s32.totalorder %s135, %s137
      %p144 = scmp.eq.s32.totalorder %s22, 1
      %p145 = por %p143, %p144
      %p146 = scmp.ne.s32.totalorder %s137, %s138
      %p147 = scmp.eq.s32.totalorder %s22, 0
      %p148 = por %p146, %p147
      %p149 = scmp.ne.s32.totalorder %s137, %s138
      %p150 = scmp.eq.s32.totalorder %s23, 1
      %p151 = por %p149, %p150
      %p153 = scmp.ne.s32.totalorder %s138, %s152
      %p154 = scmp.eq.s32.totalorder %s23, 0
      %p155 = por %p153, %p154
      %s157 = sadd.s32 %s156, 1
      %p160 = scmp.eq.s32.totalorder %s17, 1
      %p161 = scmp.ne.s32.totalorder %s156, %s158
      %p162 = scmp.eq.s32.totalorder %s17, 0
      %p163 = por %p161, %p162
      %p164 = scmp.ne.s32.totalorder %s156, %s158
      %p165 = scmp.eq.s32.totalorder %s22, 1
      %p166 = por %p164, %p165
      %p167 = scmp.ne.s32.totalorder %s158, %s159
      %p168 = scmp.eq.s32.totalorder %s22, 0
      %p169 = por %p167, %p168
      %p170 = scmp.ne.s32.totalorder %s158, %s159
      %p171 = scmp.eq.s32.totalorder %s23, 1
      %p172 = por %p170, %p171
      %p174 = scmp.ne.s32.totalorder %s159, %s173
      %p175 = scmp.eq.s32.totalorder %s23, 0
      %p176 = por %p174, %p175
      %s177 = ssub.s32 %s17, %s24
      %p178 = scmp.eq.s32.totalorder %s177, 0
      %s180 = sadd.s32 %s179, 1
      %s181 = scalar_select %p178, %s179, %s180
      %p184 = pneg %p178
      %p185 = scmp.eq.s32.totalorder %s17, 1
      %p186 = por %p184, %p185
      %p187 = scmp.ne.s32.totalorder %s179, %s182
      %p188 = scmp.eq.s32.totalorder %s17, 0
      %p189 = por %p187, %p188
      %p190 = scmp.ne.s32.totalorder %s179, %s182
      %p191 = scmp.eq.s32.totalorder %s22, 1
      %p192 = por %p190, %p191
      %p193 = scmp.ne.s32.totalorder %s182, %s183
      %p194 = scmp.eq.s32.totalorder %s22, 0
      %p195 = por %p193, %p194
      %p196 = scmp.ne.s32.totalorder %s182, %s183
      %p197 = scmp.eq.s32.totalorder %s23, 1
      %p198 = por %p196, %p197
      %p200 = scmp.ne.s32.totalorder %s183, %s199
      %p201 = scmp.eq.s32.totalorder %s23, 0
      %p202 = por %p200, %p201
      %p203 = scmp.le.s32.totalorder 1, %s17
      %p204 = scmp.lt.s32.totalorder %s17, 3
      %p205 = pnand %p203, %p204
      %p206 = pneg %p205
      // Predicated region
      $region9: #{postnet_forward.1} parent=5 // pred_check
        _
      $region10: #{postnet_forward.1} parent=5 // pred_check_branch
        %208 = sbr.rel (%p205) target = $region12
      $region11: #{postnet_forward.1} parent=5 // pred_region
        %s209 = ssub.s32 %s17, 1
        // Predicated region
        $region13: #{postnet_forward.1} parent=11 // pred_check
          %p210 = pneg %p64
        $region14: #{postnet_forward.1} parent=11 // pred_check_branch
          %212 = sbr.rel (%p210) target = $region16
        $region15: #{postnet_forward.1} parent=11 // pred_region
          %214 = vsyncadd [#allocation3], 0
          %s215 = sshll.u32 %s1, 4
          %s216 = int_to_ptr.hbm [resolvable:$true] %s215
          %s217 = sshll.u32 [#allocation2], 4
          %s218 = int_to_ptr.vmem [resolvable:$true] %s217
          %223 = dma.hbm_to_vmem [thread:$0]  %s216, 12288, %s218, [#allocation3], 768, 768, 48
        $region16: #{postnet_forward.1} parent=11 // pred_fallthru
          _
        // Predicated region
        $region17: #{postnet_forward.1} parent=11 // pred_check
          %p224 = pneg %p85
        $region18: #{postnet_forward.1} parent=11 // pred_check_branch
          %226 = sbr.rel (%p224) target = $region20
        $region19: #{postnet_forward.1} parent=11 // pred_region
          %228 = vsyncadd [#allocation5], 0
          %s230 = sshll.u32 %s2, 4
          %s231 = int_to_ptr.hbm [resolvable:$true] %s230
          %s232 = sshll.u32 [#allocation4], 4
          %s233 = int_to_ptr.vmem [resolvable:$true] %s232
          %235 = dma.hbm_to_vmem [thread:$0]  %s231, 32, %s233, [#allocation5]
        $region20: #{postnet_forward.1} parent=11 // pred_fallthru
          _
        // Predicated region
        $region21: #{postnet_forward.1} parent=11 // pred_check
          %p236 = pneg %p106
        $region22: #{postnet_forward.1} parent=11 // pred_check_branch
          %238 = sbr.rel (%p236) target = $region24
        $region23: #{postnet_forward.1} parent=11 // pred_region
          %240 = vsyncadd [#allocation5], 0
          %s241 = sshll.u32 %s3, 4
          %s242 = int_to_ptr.hbm [resolvable:$true] %s241
          %s243 = sshll.u32 [#allocation6], 4
          %s244 = int_to_ptr.vmem [resolvable:$true] %s243
          %249 = dma.hbm_to_vmem [thread:$0]  %s242, 73728, %s244, [#allocation5], 768, 768, 48
        $region24: #{postnet_forward.1} parent=11 // pred_fallthru
          _
        // Predicated region
        $region25: #{postnet_forward.1} parent=11 // pred_check
          %p250 = pneg %p127
        $region26: #{postnet_forward.1} parent=11 // pred_check_branch
          %252 = sbr.rel (%p250) target = $region28
        $region27: #{postnet_forward.1} parent=11 // pred_region
          %254 = vsyncadd [#allocation8], 0
          %s255 = sshll.u32 %s4, 4
          %s256 = int_to_ptr.hbm [resolvable:$true] %s255
          %s257 = sshll.u32 [#allocation7], 4
          %s258 = int_to_ptr.vmem [resolvable:$true] %s257
          %263 = dma.hbm_to_vmem [thread:$0]  %s256, 96, %s258, [#allocation8], 32, 32, 2
        $region28: #{postnet_forward.1} parent=11 // pred_fallthru
          _
        // Predicated region
        $region29: #{postnet_forward.1} parent=11 // pred_check
          %p264 = pneg %p148
        $region30: #{postnet_forward.1} parent=11 // pred_check_branch
          %266 = sbr.rel (%p264) target = $region32
        $region31: #{postnet_forward.1} parent=11 // pred_region
          %268 = vsyncadd [#allocation8], 0
          %s269 = sshll.u32 %s5, 4
          %s270 = int_to_ptr.hbm [resolvable:$true] %s269
          %s271 = sshll.u32 [#allocation9], 4
          %s272 = int_to_ptr.vmem [resolvable:$true] %s271
          %277 = dma.hbm_to_vmem [thread:$0]  %s270, 12288, %s272, [#allocation8], 384, 384, 24
        $region32: #{postnet_forward.1} parent=11 // pred_fallthru
          _
        // Predicated region
        $region33: #{postnet_forward.1} parent=11 // pred_check
          %p278 = pneg %p169
        $region34: #{postnet_forward.1} parent=11 // pred_check_branch
          %280 = sbr.rel (%p278) target = $region36
        $region35: #{postnet_forward.1} parent=11 // pred_region
          %282 = vsyncadd [#allocation11], 0
          %s284 = sshll.u32 %s6, 4
          %s285 = int_to_ptr.hbm [resolvable:$true] %s284
          %s286 = sshll.u32 [#allocation10], 4
          %s287 = int_to_ptr.vmem [resolvable:$true] %s286
          %289 = dma.hbm_to_vmem [thread:$0]  %s285, 16, %s287, [#allocation11]
        $region36: #{postnet_forward.1} parent=11 // pred_fallthru
          _
      $region12: #{postnet_forward.1} parent=5 // pred_fallthru
        _
      %p290 = scmp.lt.s32.totalorder %s17, 2
      // Predicated region
      $region37: #{postnet_forward.1} parent=5 // pred_check
        %p291 = pneg %p290
      $region38: #{postnet_forward.1} parent=5 // pred_check_branch
        %293 = sbr.rel (%p291) target = $region40
      $region39: #{postnet_forward.1} parent=5 // pred_region
        // Predicated region
        $region41: #{postnet_forward.1} parent=39 // pred_check
          %p294 = pneg %p37
        $region42: #{postnet_forward.1} parent=39 // pred_check_branch
          %296 = sbr.rel (%p294) target = $region44
        $region43: #{postnet_forward.1} parent=39 // pred_region
          %p297 = scmp.lt.s32.totalorder %s17, 1
          %s298 = scalar_select %p297, %s17, 1
          %s299 = smul.addr %s298, 2
          %s300 = smul.addr %s299, 8
          %s301 = scalar_lea.vmem %s0, %s300
        $region44: #{postnet_forward.1} parent=39 // pred_fallthru
          _
      $region40: #{postnet_forward.1} parent=5 // pred_fallthru
        _
      %p302 = scmp.le.s32.totalorder 1, %s17
      %p303 = scmp.lt.s32.totalorder %s17, 3
      %p304 = pnand %p302, %p303
      %p305 = pneg %p304
      // Predicated region
      $region45: #{postnet_forward.1} parent=5 // pred_check
        _
      $region46: #{postnet_forward.1} parent=5 // pred_check_branch
        %307 = sbr.rel (%p304) target = $region48
      $region47: #{postnet_forward.1} parent=5 // pred_region
        %s308 = ssub.s32 %s17, 1
        // Predicated region
        $region49: #{postnet_forward.1} parent=47 // pred_check
          %p309 = pneg %p64
        $region50: #{postnet_forward.1} parent=47 // pred_check_branch
          %311 = sbr.rel (%p309) target = $region52
        $region51: #{postnet_forward.1} parent=47 // pred_region
          %313 = dma.done [#allocation3], 12288
        $region52: #{postnet_forward.1} parent=47 // pred_fallthru
          _
        // Predicated region
        $region53: #{postnet_forward.1} parent=47 // pred_check
          %p314 = pneg %p85
        $region54: #{postnet_forward.1} parent=47 // pred_check_branch
          %316 = sbr.rel (%p314) target = $region56
        $region55: #{postnet_forward.1} parent=47 // pred_region
          %318 = dma.done [#allocation5], 32
        $region56: #{postnet_forward.1} parent=47 // pred_fallthru
          _
        // Predicated region
        $region57: #{postnet_forward.1} parent=47 // pred_check
          %p319 = pneg %p106
        $region58: #{postnet_forward.1} parent=47 // pred_check_branch
          %321 = sbr.rel (%p319) target = $region60
        $region59: #{postnet_forward.1} parent=47 // pred_region
          %323 = dma.done [#allocation5], 73728
        $region60: #{postnet_forward.1} parent=47 // pred_fallthru
          _
        // Predicated region
        $region61: #{postnet_forward.1} parent=47 // pred_check
          %p324 = pneg %p127
        $region62: #{postnet_forward.1} parent=47 // pred_check_branch
          %326 = sbr.rel (%p324) target = $region64
        $region63: #{postnet_forward.1} parent=47 // pred_region
          %328 = dma.done [#allocation8], 96
        $region64: #{postnet_forward.1} parent=47 // pred_fallthru
          _
        // Predicated region
        $region65: #{postnet_forward.1} parent=47 // pred_check
          %p329 = pneg %p148
        $region66: #{postnet_forward.1} parent=47 // pred_check_branch
          %331 = sbr.rel (%p329) target = $region68
        $region67: #{postnet_forward.1} parent=47 // pred_region
          %333 = dma.done [#allocation8], 12288
        $region68: #{postnet_forward.1} parent=47 // pred_fallthru
          _
        // Predicated region
        $region69: #{postnet_forward.1} parent=47 // pred_check
          %p334 = pneg %p169
        $region70: #{postnet_forward.1} parent=47 // pred_check_branch
          %336 = sbr.rel (%p334) target = $region72
        $region71: #{postnet_forward.1} parent=47 // pred_region
          %338 = dma.done [#allocation11], 16
        $region72: #{postnet_forward.1} parent=47 // pred_fallthru
          _
        %p339 = scmp.lt.s32.totalorder %s22, 1
        %s340 = scalar_select %p339, %s22, 1
        %s341 = smul.addr %s340, 2
        %s342 = smul.addr %s341, 8
        %s343 = scalar_lea.vmem %s0, %s342
        %p344 = pneg %p43
        %p345 = pneg %p40
        %p346 = pneg %p64
        %p347 = pneg %p61
        %p348 = pneg %p85
        %p349 = pneg %p82
        %p350 = pneg %p106
        %p351 = pneg %p103
        %p352 = pneg %p127
        %p353 = pneg %p124
        %p354 = pneg %p148
        %p355 = pneg %p145
        %p356 = pneg %p169
        %p357 = pneg %p166
        %p358 = pneg %p195
        %p359 = pneg %p192
        %p360 = scmp.lt.s32.totalorder %s22, 1
        %s361 = scalar_select %p360, %s22, 1
        %s362 = smul.addr %s361, 2
        %s363 = smul.addr %s362, 8
        %s364 = scalar_lea.vmem %s7, %s363
        %p365 = scmp.lt.s32.totalorder %s22, 1
        %s366 = scalar_select %p365, %s22, 1
        %s367 = smul.addr %s366, 2
        %s368 = smul.addr %s367, 8
        %s369 = scalar_lea.vmem %s0, %s368
        %p370 = scmp.lt.s32.totalorder %s22, 1
        %s371 = scalar_select %p370, %s22, 1
        %s372 = smul.addr %s371, 2
        %s373 = smul.addr %s372, 8
        %s374 = scalar_lea.vmem %s7, %s373
        %v375 = vld [vmem:[%s369] sm:$0xff]
        %v376 = vld [vmem:[%s369 + $0x8] sm:$0xff]
        %v377 = vld [vmem:[#allocation2] sm:$0xff]
        %v378 = vld [vmem:[#allocation2 + $0x8] sm:$0xff]
        %v379 = vld [vmem:[#allocation2 + $0x10] sm:$0xff]
        %v380 = vld [vmem:[#allocation2 + $0x18] sm:$0xff]
        %v381 = vld [vmem:[#allocation2 + $0x20] sm:$0xff]
        %v382 = vld [vmem:[#allocation2 + $0x28] sm:$0xff]
        %v383 = vld [vmem:[#allocation2 + $0x30] sm:$0xff]
        %v384 = vld [vmem:[#allocation2 + $0x38] sm:$0xff]
        %v385 = vld [vmem:[#allocation2 + $0x40] sm:$0xff]
        %v386 = vld [vmem:[#allocation2 + $0x48] sm:$0xff]
        %v387 = vld [vmem:[#allocation2 + $0x50] sm:$0xff]
        %v388 = vld [vmem:[#allocation2 + $0x58] sm:$0xff]
        %v389 = vld [vmem:[#allocation2 + $0x60] sm:$0xff]
        %v390 = vld [vmem:[#allocation2 + $0x68] sm:$0xff]
        %v391 = vld [vmem:[#allocation2 + $0x70] sm:$0xff]
        %v392 = vld [vmem:[#allocation2 + $0x78] sm:$0xff]
        %v393 = vld [vmem:[#allocation2 + $0x80] sm:$0xff]
        %v394 = vld [vmem:[#allocation2 + $0x88] sm:$0xff]
        %v395 = vld [vmem:[#allocation2 + $0x90] sm:$0xff]
        %v396 = vld [vmem:[#allocation2 + $0x98] sm:$0xff]
        %v397 = vld [vmem:[#allocation2 + $0xa0] sm:$0xff]
        %v398 = vld [vmem:[#allocation2 + $0xa8] sm:$0xff]
        %v399 = vld [vmem:[#allocation2 + $0xb0] sm:$0xff]
        %v400 = vld [vmem:[#allocation2 + $0xb8] sm:$0xff]
        %v401 = vld [vmem:[#allocation2 + $0xc0] sm:$0xff]
        %v402 = vld [vmem:[#allocation2 + $0xc8] sm:$0xff]
        %v403 = vld [vmem:[#allocation2 + $0xd0] sm:$0xff]
        %v404 = vld [vmem:[#allocation2 + $0xd8] sm:$0xff]
        %v405 = vld [vmem:[#allocation2 + $0xe0] sm:$0xff]
        %v406 = vld [vmem:[#allocation2 + $0xe8] sm:$0xff]
        %v407 = vld [vmem:[#allocation2 + $0xf0] sm:$0xff]
        %v408 = vld [vmem:[#allocation2 + $0xf8] sm:$0xff]
        %v409 = vld [vmem:[#allocation2 + $0x100] sm:$0xff]
        %v410 = vld [vmem:[#allocation2 + $0x108] sm:$0xff]
        %v411 = vld [vmem:[#allocation2 + $0x110] sm:$0xff]
        %v412 = vld [vmem:[#allocation2 + $0x118] sm:$0xff]
        %v413 = vld [vmem:[#allocation2 + $0x120] sm:$0xff]
        %v414 = vld [vmem:[#allocation2 + $0x128] sm:$0xff]
        %v415 = vld [vmem:[#allocation2 + $0x130] sm:$0xff]
        %v416 = vld [vmem:[#allocation2 + $0x138] sm:$0xff]
        %v417 = vld [vmem:[#allocation2 + $0x140] sm:$0xff]
        %v418 = vld [vmem:[#allocation2 + $0x148] sm:$0xff]
        %v419 = vld [vmem:[#allocation2 + $0x150] sm:$0xff]
        %v420 = vld [vmem:[#allocation2 + $0x158] sm:$0xff]
        %v421 = vld [vmem:[#allocation2 + $0x160] sm:$0xff]
        %v422 = vld [vmem:[#allocation2 + $0x168] sm:$0xff]
        %v423 = vld [vmem:[#allocation2 + $0x170] sm:$0xff]
        %v424 = vld [vmem:[#allocation2 + $0x178] sm:$0xff]
        %v425 = vld [vmem:[#allocation2 + $0x180] sm:$0xff]
        %v426 = vld [vmem:[#allocation2 + $0x188] sm:$0xff]
        %v427 = vld [vmem:[#allocation2 + $0x190] sm:$0xff]
        %v428 = vld [vmem:[#allocation2 + $0x198] sm:$0xff]
        %v429 = vld [vmem:[#allocation2 + $0x1a0] sm:$0xff]
        %v430 = vld [vmem:[#allocation2 + $0x1a8] sm:$0xff]
        %v431 = vld [vmem:[#allocation2 + $0x1b0] sm:$0xff]
        %v432 = vld [vmem:[#allocation2 + $0x1b8] sm:$0xff]
        %v433 = vld [vmem:[#allocation2 + $0x1c0] sm:$0xff]
        %v434 = vld [vmem:[#allocation2 + $0x1c8] sm:$0xff]
        %v435 = vld [vmem:[#allocation2 + $0x1d0] sm:$0xff]
        %v436 = vld [vmem:[#allocation2 + $0x1d8] sm:$0xff]
        %v437 = vld [vmem:[#allocation2 + $0x1e0] sm:$0xff]
        %v438 = vld [vmem:[#allocation2 + $0x1e8] sm:$0xff]
        %v439 = vld [vmem:[#allocation2 + $0x1f0] sm:$0xff]
        %v440 = vld [vmem:[#allocation2 + $0x1f8] sm:$0xff]
        %v441 = vld [vmem:[#allocation2 + $0x200] sm:$0xff]
        %v442 = vld [vmem:[#allocation2 + $0x208] sm:$0xff]
        %v443 = vld [vmem:[#allocation2 + $0x210] sm:$0xff]
        %v444 = vld [vmem:[#allocation2 + $0x218] sm:$0xff]
        %v445 = vld [vmem:[#allocation2 + $0x220] sm:$0xff]
        %v446 = vld [vmem:[#allocation2 + $0x228] sm:$0xff]
        %v447 = vld [vmem:[#allocation2 + $0x230] sm:$0xff]
        %v448 = vld [vmem:[#allocation2 + $0x238] sm:$0xff]
        %v449 = vld [vmem:[#allocation2 + $0x240] sm:$0xff]
        %v450 = vld [vmem:[#allocation2 + $0x248] sm:$0xff]
        %v451 = vld [vmem:[#allocation2 + $0x250] sm:$0xff]
        %v452 = vld [vmem:[#allocation2 + $0x258] sm:$0xff]
        %v453 = vld [vmem:[#allocation2 + $0x260] sm:$0xff]
        %v454 = vld [vmem:[#allocation2 + $0x268] sm:$0xff]
        %v455 = vld [vmem:[#allocation2 + $0x270] sm:$0xff]
        %v456 = vld [vmem:[#allocation2 + $0x278] sm:$0xff]
        %v457 = vld [vmem:[#allocation2 + $0x280] sm:$0xff]
        %v458 = vld [vmem:[#allocation2 + $0x288] sm:$0xff]
        %v459 = vld [vmem:[#allocation2 + $0x290] sm:$0xff]
        %v460 = vld [vmem:[#allocation2 + $0x298] sm:$0xff]
        %v461 = vld [vmem:[#allocation2 + $0x2a0] sm:$0xff]
        %v462 = vld [vmem:[#allocation2 + $0x2a8] sm:$0xff]
        %v463 = vld [vmem:[#allocation2 + $0x2b0] sm:$0xff]
        %v464 = vld [vmem:[#allocation2 + $0x2b8] sm:$0xff]
        %v465 = vld [vmem:[#allocation2 + $0x2c0] sm:$0xff]
        %v466 = vld [vmem:[#allocation2 + $0x2c8] sm:$0xff]
        %v467 = vld [vmem:[#allocation2 + $0x2d0] sm:$0xff]
        %v468 = vld [vmem:[#allocation2 + $0x2d8] sm:$0xff]
        %v469 = vld [vmem:[#allocation2 + $0x2e0] sm:$0xff]
        %v470 = vld [vmem:[#allocation2 + $0x2e8] sm:$0xff]
        %v471 = vld [vmem:[#allocation2 + $0x2f0] sm:$0xff]
        %v472 = vld [vmem:[#allocation2 + $0x2f8] sm:$0xff]
        %v473 = vld [vmem:[#allocation4] sm:$0x3]
        %474 = vmatpush.msra.mxu0 %v467
        %475 = vmatpush.msra.mxu0 %v461
        %476 = vmatpush.msra.mxu0 %v455
        %477 = vmatpush.msra.mxu0 %v449
        %478 = vmatpush.msra.mxu0 %v443
        %479 = vmatpush.msra.mxu0 %v437
        %480 = vmatpush.msra.mxu0 %v431
        %481 = vmatpush.msra.mxu0 %v425
        %482 = vmatpush.msra.mxu0 %v419
        %483 = vmatpush.msra.mxu0 %v413
        %484 = vmatpush.msra.mxu0 %v407
        %485 = vmatpush.msra.mxu0 %v401
        %486 = vmatpush.msra.mxu0 %v395
        %487 = vmatpush.msra.mxu0 %v389
        %488 = vmatpush.msra.mxu0 %v383
        %489 = vmatpush.msra.mxu0 %v377
        %490 = vmatmul.f32.gmra.mxu0 %v375
        %v491 = vpop.f32.mrf.mxu0
        %v492 = vadd.f32 0.0, %v491
        %493 = vmatmul.f32.gmra.mxu0 %v376
        %v494 = vpop.f32.mrf.mxu0
        %v495 = vadd.f32 0.0, %v494
        %496 = vdwg.mxu0
        %497 = vmatpush.msra.mxu0 %v468
        %498 = vmatpush.msra.mxu0 %v462
        %499 = vmatpush.msra.mxu0 %v456
        %500 = vmatpush.msra.mxu0 %v450
        %501 = vmatpush.msra.mxu0 %v444
        %502 = vmatpush.msra.mxu0 %v438
        %503 = vmatpush.msra.mxu0 %v432
        %504 = vmatpush.msra.mxu0 %v426
        %505 = vmatpush.msra.mxu0 %v420
        %506 = vmatpush.msra.mxu0 %v414
        %507 = vmatpush.msra.mxu0 %v408
        %508 = vmatpush.msra.mxu0 %v402
        %509 = vmatpush.msra.mxu0 %v396
        %510 = vmatpush.msra.mxu0 %v390
        %511 = vmatpush.msra.mxu0 %v384
        %512 = vmatpush.msra.mxu0 %v378
        %513 = vmatmul.f32.gmra.mxu0 %v375
        %v514 = vpop.f32.mrf.mxu0
        %v515 = vadd.f32 0.0, %v514
        %516 = vmatmul.f32.gmra.mxu0 %v376
        %v517 = vpop.f32.mrf.mxu0
        %v518 = vadd.f32 0.0, %v517
        %519 = vdwg.mxu0
        %520 = vmatpush.msra.mxu0 %v469
        %521 = vmatpush.msra.mxu0 %v463
        %522 = vmatpush.msra.mxu0 %v457
        %523 = vmatpush.msra.mxu0 %v451
        %524 = vmatpush.msra.mxu0 %v445
        %525 = vmatpush.msra.mxu0 %v439
        %526 = vmatpush.msra.mxu0 %v433
        %527 = vmatpush.msra.mxu0 %v427
        %528 = vmatpush.msra.mxu0 %v421
        %529 = vmatpush.msra.mxu0 %v415
        %530 = vmatpush.msra.mxu0 %v409
        %531 = vmatpush.msra.mxu0 %v403
        %532 = vmatpush.msra.mxu0 %v397
        %533 = vmatpush.msra.mxu0 %v391
        %534 = vmatpush.msra.mxu0 %v385
        %535 = vmatpush.msra.mxu0 %v379
        %536 = vmatmul.f32.gmra.mxu0 %v375
        %v537 = vpop.f32.mrf.mxu0
        %v538 = vadd.f32 0.0, %v537
        %539 = vmatmul.f32.gmra.mxu0 %v376
        %v540 = vpop.f32.mrf.mxu0
        %v541 = vadd.f32 0.0, %v540
        %542 = vdwg.mxu0
        %543 = vmatpush.msra.mxu0 %v470
        %544 = vmatpush.msra.mxu0 %v464
        %545 = vmatpush.msra.mxu0 %v458
        %546 = vmatpush.msra.mxu0 %v452
        %547 = vmatpush.msra.mxu0 %v446
        %548 = vmatpush.msra.mxu0 %v440
        %549 = vmatpush.msra.mxu0 %v434
        %550 = vmatpush.msra.mxu0 %v428
        %551 = vmatpush.msra.mxu0 %v422
        %552 = vmatpush.msra.mxu0 %v416
        %553 = vmatpush.msra.mxu0 %v410
        %554 = vmatpush.msra.mxu0 %v404
        %555 = vmatpush.msra.mxu0 %v398
        %556 = vmatpush.msra.mxu0 %v392
        %557 = vmatpush.msra.mxu0 %v386
        %558 = vmatpush.msra.mxu0 %v380
        %559 = vmatmul.f32.gmra.mxu0 %v375
        %v560 = vpop.f32.mrf.mxu0
        %v561 = vadd.f32 0.0, %v560
        %562 = vmatmul.f32.gmra.mxu0 %v376
        %v563 = vpop.f32.mrf.mxu0
        %v564 = vadd.f32 0.0, %v563
        %565 = vdwg.mxu0
        %566 = vmatpush.msra.mxu0 %v471
        %567 = vmatpush.msra.mxu0 %v465
        %568 = vmatpush.msra.mxu0 %v459
        %569 = vmatpush.msra.mxu0 %v453
        %570 = vmatpush.msra.mxu0 %v447
        %571 = vmatpush.msra.mxu0 %v441
        %572 = vmatpush.msra.mxu0 %v435
        %573 = vmatpush.msra.mxu0 %v429
        %574 = vmatpush.msra.mxu0 %v423
        %575 = vmatpush.msra.mxu0 %v417
        %576 = vmatpush.msra.mxu0 %v411
        %577 = vmatpush.msra.mxu0 %v405
        %578 = vmatpush.msra.mxu0 %v399
        %579 = vmatpush.msra.mxu0 %v393
        %580 = vmatpush.msra.mxu0 %v387
        %581 = vmatpush.msra.mxu0 %v381
        %582 = vmatmul.f32.gmra.mxu0 %v375
        %v583 = vpop.f32.mrf.mxu0
        %v584 = vadd.f32 0.0, %v583
        %585 = vmatmul.f32.gmra.mxu0 %v376
        %v586 = vpop.f32.mrf.mxu0
        %v587 = vadd.f32 0.0, %v586
        %588 = vdwg.mxu0
        %589 = vmatpush.msra.mxu0 %v472
        %590 = vmatpush.msra.mxu0 %v466
        %591 = vmatpush.msra.mxu0 %v460
        %592 = vmatpush.msra.mxu0 %v454
        %593 = vmatpush.msra.mxu0 %v448
        %594 = vmatpush.msra.mxu0 %v442
        %595 = vmatpush.msra.mxu0 %v436
        %596 = vmatpush.msra.mxu0 %v430
        %597 = vmatpush.msra.mxu0 %v424
        %598 = vmatpush.msra.mxu0 %v418
        %599 = vmatpush.msra.mxu0 %v412
        %600 = vmatpush.msra.mxu0 %v406
        %601 = vmatpush.msra.mxu0 %v400
        %602 = vmatpush.msra.mxu0 %v394
        %603 = vmatpush.msra.mxu0 %v388
        %604 = vmatpush.msra.mxu0 %v382
        %605 = vmatmul.f32.gmra.mxu0 %v375
        %v606 = vpop.f32.mrf.mxu0
        %v607 = vadd.f32 0.0, %v606
        %608 = vmatmul.f32.gmra.mxu0 %v376
        %v609 = vpop.f32.mrf.mxu0
        %v610 = vadd.f32 0.0, %v609
        %611 = vdwg.mxu0
        %v612 = vlaneseq
        %v613 = vshrl.u32 %v612, 7
        %v614 = vadd.s32 %v613, 8
        %vm615 = vcmp.eq.s32.totalorder %v613, 0
        %vm616 = vcmp.eq.s32.totalorder %v614, 0
        %v617 = vrot.slane %v492, 7
        %v618 = vrot.slane %v515, 7
        %v619 = vrot.slane %v495, 7
        %v620 = vrot.slane %v518, 7
        %vm621 = vcmp.lt.s32.totalorder %v613, 1
        %v622 = vsel %vm621, %v617, %v619
        %v623 = vsel %vm621, %v618, %v620
        %v624 = vsel %vm621, %v619, %v617
        %v625 = vsel %vm621, %v620, %v618
        %v626 = vsel %vm615, 0.0, %v624
        %v627 = vsel %vm615, 0.0, %v625
        %v628 = vsel %vm616, 0.0, %v622
        %v629 = vsel %vm616, 0.0, %v623
        %vm630 = vcmp.ge.s32.totalorder %v613, 15
        %vm631 = vcmp.ge.s32.totalorder %v614, 15
        %v632 = vrot.slane %v584, 1
        %v633 = vrot.slane %v607, 1
        %v634 = vrot.slane %v587, 1
        %v635 = vrot.slane %v610, 1
        %vm636 = vcmp.lt.s32.totalorder %v613, 7
        %v637 = vsel %vm636, %v632, %v634
        %v638 = vsel %vm636, %v633, %v635
        %v639 = vsel %vm636, %v634, %v632
        %v640 = vsel %vm636, %v635, %v633
        %v641 = vsel %vm630, 0.0, %v637
        %v642 = vsel %vm630, 0.0, %v638
        %v643 = vsel %vm631, 0.0, %v639
        %v644 = vsel %vm631, 0.0, %v640
        %v645 = vadd.f32 %v626, %v538
        %v646 = vadd.f32 %v627, %v561
        %v647 = vadd.f32 %v628, %v541
        %v648 = vadd.f32 %v629, %v564
        %v649 = vadd.f32 %v645, %v641
        %v650 = vadd.f32 %v646, %v642
        %v651 = vadd.f32 %v647, %v643
        %v652 = vadd.f32 %v648, %v644
        %v654 = vperm.slane %v473, 0
        %v655 = vperm.slane %v473, 1
        %v658 = vadd.f32 %v649, %v654
        %v659 = vadd.f32 %v650, %v655
        %v660 = vadd.f32 %v651, %v654
        %v661 = vadd.f32 %v652, %v655
        %v662 = vld [vmem:[#allocation6] sm:$0xff]
        %v663 = vld [vmem:[#allocation6 + $0x8] sm:$0xff]
        %v664 = vld [vmem:[#allocation6 + $0x10] sm:$0xff]
        %v665 = vld [vmem:[#allocation6 + $0x18] sm:$0xff]
        %v666 = vld [vmem:[#allocation6 + $0x20] sm:$0xff]
        %v667 = vld [vmem:[#allocation6 + $0x28] sm:$0xff]
        %v668 = vld [vmem:[#allocation6 + $0x30] sm:$0xff]
        %v669 = vld [vmem:[#allocation6 + $0x38] sm:$0xff]
        %v670 = vld [vmem:[#allocation6 + $0x40] sm:$0xff]
        %v671 = vld [vmem:[#allocation6 + $0x48] sm:$0xff]
        %v672 = vld [vmem:[#allocation6 + $0x50] sm:$0xff]
        %v673 = vld [vmem:[#allocation6 + $0x58] sm:$0xff]
        %v674 = vld [vmem:[#allocation6 + $0x60] sm:$0xff]
        %v675 = vld [vmem:[#allocation6 + $0x68] sm:$0xff]
        %v676 = vld [vmem:[#allocation6 + $0x70] sm:$0xff]
        %v677 = vld [vmem:[#allocation6 + $0x78] sm:$0xff]
        %v678 = vld [vmem:[#allocation6 + $0x80] sm:$0xff]
        %v679 = vld [vmem:[#allocation6 + $0x88] sm:$0xff]
        %v680 = vld [vmem:[#allocation6 + $0x90] sm:$0xff]
        %v681 = vld [vmem:[#allocation6 + $0x98] sm:$0xff]
        %v682 = vld [vmem:[#allocation6 + $0xa0] sm:$0xff]
        %v683 = vld [vmem:[#allocation6 + $0xa8] sm:$0xff]
        %v684 = vld [vmem:[#allocation6 + $0xb0] sm:$0xff]
        %v685 = vld [vmem:[#allocation6 + $0xb8] sm:$0xff]
        %v686 = vld [vmem:[#allocation6 + $0xc0] sm:$0xff]
        %v687 = vld [vmem:[#allocation6 + $0xc8] sm:$0xff]
        %v688 = vld [vmem:[#allocation6 + $0xd0] sm:$0xff]
        %v689 = vld [vmem:[#allocation6 + $0xd8] sm:$0xff]
        %v690 = vld [vmem:[#allocation6 + $0xe0] sm:$0xff]
        %v691 = vld [vmem:[#allocation6 + $0xe8] sm:$0xff]
        %v692 = vld [vmem:[#allocation6 + $0xf0] sm:$0xff]
        %v693 = vld [vmem:[#allocation6 + $0xf8] sm:$0xff]
        %v694 = vld [vmem:[#allocation6 + $0x100] sm:$0xff]
        %v695 = vld [vmem:[#allocation6 + $0x108] sm:$0xff]
        %v696 = vld [vmem:[#allocation6 + $0x110] sm:$0xff]
        %v697 = vld [vmem:[#allocation6 + $0x118] sm:$0xff]
        %v698 = vld [vmem:[#allocation6 + $0x120] sm:$0xff]
        %v699 = vld [vmem:[#allocation6 + $0x128] sm:$0xff]
        %v700 = vld [vmem:[#allocation6 + $0x130] sm:$0xff]
        %v701 = vld [vmem:[#allocation6 + $0x138] sm:$0xff]
        %v702 = vld [vmem:[#allocation6 + $0x140] sm:$0xff]
        %v703 = vld [vmem:[#allocation6 + $0x148] sm:$0xff]
        %v704 = vld [vmem:[#allocation6 + $0x150] sm:$0xff]
        %v705 = vld [vmem:[#allocation6 + $0x158] sm:$0xff]
        %v706 = vld [vmem:[#allocation6 + $0x160] sm:$0xff]
        %v707 = vld [vmem:[#allocation6 + $0x168] sm:$0xff]
        %v708 = vld [vmem:[#allocation6 + $0x170] sm:$0xff]
        %v709 = vld [vmem:[#allocation6 + $0x178] sm:$0xff]
        %v710 = vld [vmem:[#allocation6 + $0x180] sm:$0xff]
        %v711 = vld [vmem:[#allocation6 + $0x188] sm:$0xff]
        %v712 = vld [vmem:[#allocation6 + $0x190] sm:$0xff]
        %v713 = vld [vmem:[#allocation6 + $0x198] sm:$0xff]
        %v714 = vld [vmem:[#allocation6 + $0x1a0] sm:$0xff]
        %v715 = vld [vmem:[#allocation6 + $0x1a8] sm:$0xff]
        %v716 = vld [vmem:[#allocation6 + $0x1b0] sm:$0xff]
        %v717 = vld [vmem:[#allocation6 + $0x1b8] sm:$0xff]
        %v718 = vld [vmem:[#allocation6 + $0x1c0] sm:$0xff]
        %v719 = vld [vmem:[#allocation6 + $0x1c8] sm:$0xff]
        %v720 = vld [vmem:[#allocation6 + $0x1d0] sm:$0xff]
        %v721 = vld [vmem:[#allocation6 + $0x1d8] sm:$0xff]
        %v722 = vld [vmem:[#allocation6 + $0x1e0] sm:$0xff]
        %v723 = vld [vmem:[#allocation6 + $0x1e8] sm:$0xff]
        %v724 = vld [vmem:[#allocation6 + $0x1f0] sm:$0xff]
        %v725 = vld [vmem:[#allocation6 + $0x1f8] sm:$0xff]
        %v726 = vld [vmem:[#allocation6 + $0x200] sm:$0xff]
        %v727 = vld [vmem:[#allocation6 + $0x208] sm:$0xff]
        %v728 = vld [vmem:[#allocation6 + $0x210] sm:$0xff]
        %v729 = vld [vmem:[#allocation6 + $0x218] sm:$0xff]
        %v730 = vld [vmem:[#allocation6 + $0x220] sm:$0xff]
        %v731 = vld [vmem:[#allocation6 + $0x228] sm:$0xff]
        %v732 = vld [vmem:[#allocation6 + $0x230] sm:$0xff]
        %v733 = vld [vmem:[#allocation6 + $0x238] sm:$0xff]
        %v734 = vld [vmem:[#allocation6 + $0x240] sm:$0xff]
        %v735 = vld [vmem:[#allocation6 + $0x248] sm:$0xff]
        %v736 = vld [vmem:[#allocation6 + $0x250] sm:$0xff]
        %v737 = vld [vmem:[#allocation6 + $0x258] sm:$0xff]
        %v738 = vld [vmem:[#allocation6 + $0x260] sm:$0xff]
        %v739 = vld [vmem:[#allocation6 + $0x268] sm:$0xff]
        %v740 = vld [vmem:[#allocation6 + $0x270] sm:$0xff]
        %v741 = vld [vmem:[#allocation6 + $0x278] sm:$0xff]
        %v742 = vld [vmem:[#allocation6 + $0x280] sm:$0xff]
        %v743 = vld [vmem:[#allocation6 + $0x288] sm:$0xff]
        %v744 = vld [vmem:[#allocation6 + $0x290] sm:$0xff]
        %v745 = vld [vmem:[#allocation6 + $0x298] sm:$0xff]
        %v746 = vld [vmem:[#allocation6 + $0x2a0] sm:$0xff]
        %v747 = vld [vmem:[#allocation6 + $0x2a8] sm:$0xff]
        %v748 = vld [vmem:[#allocation6 + $0x2b0] sm:$0xff]
        %v749 = vld [vmem:[#allocation6 + $0x2b8] sm:$0xff]
        %v750 = vld [vmem:[#allocation6 + $0x2c0] sm:$0xff]
        %v751 = vld [vmem:[#allocation6 + $0x2c8] sm:$0xff]
        %v752 = vld [vmem:[#allocation6 + $0x2d0] sm:$0xff]
        %v753 = vld [vmem:[#allocation6 + $0x2d8] sm:$0xff]
        %v754 = vld [vmem:[#allocation6 + $0x2e0] sm:$0xff]
        %v755 = vld [vmem:[#allocation6 + $0x2e8] sm:$0xff]
        %v756 = vld [vmem:[#allocation6 + $0x2f0] sm:$0xff]
        %v757 = vld [vmem:[#allocation6 + $0x2f8] sm:$0xff]
        %v758 = vld [vmem:[#allocation6 + $0x300] sm:$0xff]
        %v759 = vld [vmem:[#allocation6 + $0x308] sm:$0xff]
        %v760 = vld [vmem:[#allocation6 + $0x310] sm:$0xff]
        %v761 = vld [vmem:[#allocation6 + $0x318] sm:$0xff]
        %v762 = vld [vmem:[#allocation6 + $0x320] sm:$0xff]
        %v763 = vld [vmem:[#allocation6 + $0x328] sm:$0xff]
        %v764 = vld [vmem:[#allocation6 + $0x330] sm:$0xff]
        %v765 = vld [vmem:[#allocation6 + $0x338] sm:$0xff]
        %v766 = vld [vmem:[#allocation6 + $0x340] sm:$0xff]
        %v767 = vld [vmem:[#allocation6 + $0x348] sm:$0xff]
        %v768 = vld [vmem:[#allocation6 + $0x350] sm:$0xff]
        %v769 = vld [vmem:[#allocation6 + $0x358] sm:$0xff]
        %v770 = vld [vmem:[#allocation6 + $0x360] sm:$0xff]
        %v771 = vld [vmem:[#allocation6 + $0x368] sm:$0xff]
        %v772 = vld [vmem:[#allocation6 + $0x370] sm:$0xff]
        %v773 = vld [vmem:[#allocation6 + $0x378] sm:$0xff]
        %v774 = vld [vmem:[#allocation6 + $0x380] sm:$0xff]
        %v775 = vld [vmem:[#allocation6 + $0x388] sm:$0xff]
        %v776 = vld [vmem:[#allocation6 + $0x390] sm:$0xff]
        %v777 = vld [vmem:[#allocation6 + $0x398] sm:$0xff]
        %v778 = vld [vmem:[#allocation6 + $0x3a0] sm:$0xff]
        %v779 = vld [vmem:[#allocation6 + $0x3a8] sm:$0xff]
        %v780 = vld [vmem:[#allocation6 + $0x3b0] sm:$0xff]
        %v781 = vld [vmem:[#allocation6 + $0x3b8] sm:$0xff]
        %v782 = vld [vmem:[#allocation6 + $0x3c0] sm:$0xff]
        %v783 = vld [vmem:[#allocation6 + $0x3c8] sm:$0xff]
        %v784 = vld [vmem:[#allocation6 + $0x3d0] sm:$0xff]
        %v785 = vld [vmem:[#allocation6 + $0x3d8] sm:$0xff]
        %v786 = vld [vmem:[#allocation6 + $0x3e0] sm:$0xff]
        %v787 = vld [vmem:[#allocation6 + $0x3e8] sm:$0xff]
        %v788 = vld [vmem:[#allocation6 + $0x3f0] sm:$0xff]
        %v789 = vld [vmem:[#allocation6 + $0x3f8] sm:$0xff]
        %v790 = vld [vmem:[#allocation6 + $0x400] sm:$0xff]
        %v791 = vld [vmem:[#allocation6 + $0x408] sm:$0xff]
        %v792 = vld [vmem:[#allocation6 + $0x410] sm:$0xff]
        %v793 = vld [vmem:[#allocation6 + $0x418] sm:$0xff]
        %v794 = vld [vmem:[#allocation6 + $0x420] sm:$0xff]
        %v795 = vld [vmem:[#allocation6 + $0x428] sm:$0xff]
        %v796 = vld [vmem:[#allocation6 + $0x430] sm:$0xff]
        %v797 = vld [vmem:[#allocation6 + $0x438] sm:$0xff]
        %v798 = vld [vmem:[#allocation6 + $0x440] sm:$0xff]
        %v799 = vld [vmem:[#allocation6 + $0x448] sm:$0xff]
        %v800 = vld [vmem:[#allocation6 + $0x450] sm:$0xff]
        %v801 = vld [vmem:[#allocation6 + $0x458] sm:$0xff]
        %v802 = vld [vmem:[#allocation6 + $0x460] sm:$0xff]
        %v803 = vld [vmem:[#allocation6 + $0x468] sm:$0xff]
        %v804 = vld [vmem:[#allocation6 + $0x470] sm:$0xff]
        %v805 = vld [vmem:[#allocation6 + $0x478] sm:$0xff]
        %v806 = vld [vmem:[#allocation6 + $0x480] sm:$0xff]
        %v807 = vld [vmem:[#allocation6 + $0x488] sm:$0xff]
        %v808 = vld [vmem:[#allocation6 + $0x490] sm:$0xff]
        %v809 = vld [vmem:[#allocation6 + $0x498] sm:$0xff]
        %v810 = vld [vmem:[#allocation6 + $0x4a0] sm:$0xff]
        %v811 = vld [vmem:[#allocation6 + $0x4a8] sm:$0xff]
        %v812 = vld [vmem:[#allocation6 + $0x4b0] sm:$0xff]
        %v813 = vld [vmem:[#allocation6 + $0x4b8] sm:$0xff]
        %v814 = vld [vmem:[#allocation6 + $0x4c0] sm:$0xff]
        %v815 = vld [vmem:[#allocation6 + $0x4c8] sm:$0xff]
        %v816 = vld [vmem:[#allocation6 + $0x4d0] sm:$0xff]
        %v817 = vld [vmem:[#allocation6 + $0x4d8] sm:$0xff]
        %v818 = vld [vmem:[#allocation6 + $0x4e0] sm:$0xff]
        %v819 = vld [vmem:[#allocation6 + $0x4e8] sm:$0xff]
        %v820 = vld [vmem:[#allocation6 + $0x4f0] sm:$0xff]
        %v821 = vld [vmem:[#allocation6 + $0x4f8] sm:$0xff]
        %v822 = vld [vmem:[#allocation6 + $0x500] sm:$0xff]
        %v823 = vld [vmem:[#allocation6 + $0x508] sm:$0xff]
        %v824 = vld [vmem:[#allocation6 + $0x510] sm:$0xff]
        %v825 = vld [vmem:[#allocation6 + $0x518] sm:$0xff]
        %v826 = vld [vmem:[#allocation6 + $0x520] sm:$0xff]
        %v827 = vld [vmem:[#allocation6 + $0x528] sm:$0xff]
        %v828 = vld [vmem:[#allocation6 + $0x530] sm:$0xff]
        %v829 = vld [vmem:[#allocation6 + $0x538] sm:$0xff]
        %v830 = vld [vmem:[#allocation6 + $0x540] sm:$0xff]
        %v831 = vld [vmem:[#allocation6 + $0x548] sm:$0xff]
        %v832 = vld [vmem:[#allocation6 + $0x550] sm:$0xff]
        %v833 = vld [vmem:[#allocation6 + $0x558] sm:$0xff]
        %v834 = vld [vmem:[#allocation6 + $0x560] sm:$0xff]
        %v835 = vld [vmem:[#allocation6 + $0x568] sm:$0xff]
        %v836 = vld [vmem:[#allocation6 + $0x570] sm:$0xff]
        %v837 = vld [vmem:[#allocation6 + $0x578] sm:$0xff]
        %v838 = vld [vmem:[#allocation6 + $0x580] sm:$0xff]
        %v839 = vld [vmem:[#allocation6 + $0x588] sm:$0xff]
        %v840 = vld [vmem:[#allocation6 + $0x590] sm:$0xff]
        %v841 = vld [vmem:[#allocation6 + $0x598] sm:$0xff]
        %v842 = vld [vmem:[#allocation6 + $0x5a0] sm:$0xff]
        %v843 = vld [vmem:[#allocation6 + $0x5a8] sm:$0xff]
        %v844 = vld [vmem:[#allocation6 + $0x5b0] sm:$0xff]
        %v845 = vld [vmem:[#allocation6 + $0x5b8] sm:$0xff]
        %v846 = vld [vmem:[#allocation6 + $0x5c0] sm:$0xff]
        %v847 = vld [vmem:[#allocation6 + $0x5c8] sm:$0xff]
        %v848 = vld [vmem:[#allocation6 + $0x5d0] sm:$0xff]
        %v849 = vld [vmem:[#allocation6 + $0x5d8] sm:$0xff]
        %v850 = vld [vmem:[#allocation6 + $0x5e0] sm:$0xff]
        %v851 = vld [vmem:[#allocation6 + $0x5e8] sm:$0xff]
        %v852 = vld [vmem:[#allocation6 + $0x5f0] sm:$0xff]
        %v853 = vld [vmem:[#allocation6 + $0x5f8] sm:$0xff]
        %v854 = vld [vmem:[#allocation7] sm:$0x3]
        %855 = vmatpush.msra.mxu0 %v752
        %856 = vmatpush.msra.mxu0 %v746
        %857 = vmatpush.msra.mxu0 %v740
        %858 = vmatpush.msra.mxu0 %v734
        %859 = vmatpush.msra.mxu0 %v728
        %860 = vmatpush.msra.mxu0 %v722
        %861 = vmatpush.msra.mxu0 %v716
        %862 = vmatpush.msra.mxu0 %v710
        %863 = vmatpush.msra.mxu0 %v704
        %864 = vmatpush.msra.mxu0 %v698
        %865 = vmatpush.msra.mxu0 %v692
        %866 = vmatpush.msra.mxu0 %v686
        %867 = vmatpush.msra.mxu0 %v680
        %868 = vmatpush.msra.mxu0 %v674
        %869 = vmatpush.msra.mxu0 %v668
        %870 = vmatpush.msra.mxu0 %v662
        %871 = vmatmul.f32.gmra.mxu0 %v658
        %v872 = vpop.f32.mrf.mxu0
        %v873 = vadd.f32 0.0, %v872
        %874 = vmatmul.f32.gmra.mxu0 %v660
        %v875 = vpop.f32.mrf.mxu0
        %v876 = vadd.f32 0.0, %v875
        %877 = vdwg.mxu0
        %878 = vmatpush.msra.mxu0 %v848
        %879 = vmatpush.msra.mxu0 %v842
        %880 = vmatpush.msra.mxu0 %v836
        %881 = vmatpush.msra.mxu0 %v830
        %882 = vmatpush.msra.mxu0 %v824
        %883 = vmatpush.msra.mxu0 %v818
        %884 = vmatpush.msra.mxu0 %v812
        %885 = vmatpush.msra.mxu0 %v806
        %886 = vmatpush.msra.mxu0 %v800
        %887 = vmatpush.msra.mxu0 %v794
        %888 = vmatpush.msra.mxu0 %v788
        %889 = vmatpush.msra.mxu0 %v782
        %890 = vmatpush.msra.mxu0 %v776
        %891 = vmatpush.msra.mxu0 %v770
        %892 = vmatpush.msra.mxu0 %v764
        %893 = vmatpush.msra.mxu0 %v758
        %894 = vmatmul.f32.gmra.mxu0 %v659
        %v895 = vpop.f32.mrf.mxu0
        %v896 = vadd.f32 %v873, %v895
        %897 = vmatmul.f32.gmra.mxu0 %v661
        %v898 = vpop.f32.mrf.mxu0
        %v899 = vadd.f32 %v876, %v898
        %900 = vdwg.mxu0
        %901 = vmatpush.msra.mxu0 %v753
        %902 = vmatpush.msra.mxu0 %v747
        %903 = vmatpush.msra.mxu0 %v741
        %904 = vmatpush.msra.mxu0 %v735
        %905 = vmatpush.msra.mxu0 %v729
        %906 = vmatpush.msra.mxu0 %v723
        %907 = vmatpush.msra.mxu0 %v717
        %908 = vmatpush.msra.mxu0 %v711
        %909 = vmatpush.msra.mxu0 %v705
        %910 = vmatpush.msra.mxu0 %v699
        %911 = vmatpush.msra.mxu0 %v693
        %912 = vmatpush.msra.mxu0 %v687
        %913 = vmatpush.msra.mxu0 %v681
        %914 = vmatpush.msra.mxu0 %v675
        %915 = vmatpush.msra.mxu0 %v669
        %916 = vmatpush.msra.mxu0 %v663
        %917 = vmatmul.f32.gmra.mxu0 %v658
        %v918 = vpop.f32.mrf.mxu0
        %v919 = vadd.f32 0.0, %v918
        %920 = vmatmul.f32.gmra.mxu0 %v660
        %v921 = vpop.f32.mrf.mxu0
        %v922 = vadd.f32 0.0, %v921
        %923 = vdwg.mxu0
        %924 = vmatpush.msra.mxu0 %v849
        %925 = vmatpush.msra.mxu0 %v843
        %926 = vmatpush.msra.mxu0 %v837
        %927 = vmatpush.msra.mxu0 %v831
        %928 = vmatpush.msra.mxu0 %v825
        %929 = vmatpush.msra.mxu0 %v819
        %930 = vmatpush.msra.mxu0 %v813
        %931 = vmatpush.msra.mxu0 %v807
        %932 = vmatpush.msra.mxu0 %v801
        %933 = vmatpush.msra.mxu0 %v795
        %934 = vmatpush.msra.mxu0 %v789
        %935 = vmatpush.msra.mxu0 %v783
        %936 = vmatpush.msra.mxu0 %v777
        %937 = vmatpush.msra.mxu0 %v771
        %938 = vmatpush.msra.mxu0 %v765
        %939 = vmatpush.msra.mxu0 %v759
        %940 = vmatmul.f32.gmra.mxu0 %v659
        %v941 = vpop.f32.mrf.mxu0
        %v942 = vadd.f32 %v919, %v941
        %943 = vmatmul.f32.gmra.mxu0 %v661
        %v944 = vpop.f32.mrf.mxu0
        %v945 = vadd.f32 %v922, %v944
        %946 = vdwg.mxu0
        %947 = vmatpush.msra.mxu0 %v754
        %948 = vmatpush.msra.mxu0 %v748
        %949 = vmatpush.msra.mxu0 %v742
        %950 = vmatpush.msra.mxu0 %v736
        %951 = vmatpush.msra.mxu0 %v730
        %952 = vmatpush.msra.mxu0 %v724
        %953 = vmatpush.msra.mxu0 %v718
        %954 = vmatpush.msra.mxu0 %v712
        %955 = vmatpush.msra.mxu0 %v706
        %956 = vmatpush.msra.mxu0 %v700
        %957 = vmatpush.msra.mxu0 %v694
        %958 = vmatpush.msra.mxu0 %v688
        %959 = vmatpush.msra.mxu0 %v682
        %960 = vmatpush.msra.mxu0 %v676
        %961 = vmatpush.msra.mxu0 %v670
        %962 = vmatpush.msra.mxu0 %v664
        %963 = vmatmul.f32.gmra.mxu0 %v658
        %v964 = vpop.f32.mrf.mxu0
        %v965 = vadd.f32 0.0, %v964
        %966 = vmatmul.f32.gmra.mxu0 %v660
        %v967 = vpop.f32.mrf.mxu0
        %v968 = vadd.f32 0.0, %v967
        %969 = vdwg.mxu0
        %970 = vmatpush.msra.mxu0 %v850
        %971 = vmatpush.msra.mxu0 %v844
        %972 = vmatpush.msra.mxu0 %v838
        %973 = vmatpush.msra.mxu0 %v832
        %974 = vmatpush.msra.mxu0 %v826
        %975 = vmatpush.msra.mxu0 %v820
        %976 = vmatpush.msra.mxu0 %v814
        %977 = vmatpush.msra.mxu0 %v808
        %978 = vmatpush.msra.mxu0 %v802
        %979 = vmatpush.msra.mxu0 %v796
        %980 = vmatpush.msra.mxu0 %v790
        %981 = vmatpush.msra.mxu0 %v784
        %982 = vmatpush.msra.mxu0 %v778
        %983 = vmatpush.msra.mxu0 %v772
        %984 = vmatpush.msra.mxu0 %v766
        %985 = vmatpush.msra.mxu0 %v760
        %986 = vmatmul.f32.gmra.mxu0 %v659
        %v987 = vpop.f32.mrf.mxu0
        %v988 = vadd.f32 %v965, %v987
        %989 = vmatmul.f32.gmra.mxu0 %v661
        %v990 = vpop.f32.mrf.mxu0
        %v991 = vadd.f32 %v968, %v990
        %992 = vdwg.mxu0
        %993 = vmatpush.msra.mxu0 %v755
        %994 = vmatpush.msra.mxu0 %v749
        %995 = vmatpush.msra.mxu0 %v743
        %996 = vmatpush.msra.mxu0 %v737
        %997 = vmatpush.msra.mxu0 %v731
        %998 = vmatpush.msra.mxu0 %v725
        %999 = vmatpush.msra.mxu0 %v719
        %1000 = vmatpush.msra.mxu0 %v713
        %1001 = vmatpush.msra.mxu0 %v707
        %1002 = vmatpush.msra.mxu0 %v701
        %1003 = vmatpush.msra.mxu0 %v695
        %1004 = vmatpush.msra.mxu0 %v689
        %1005 = vmatpush.msra.mxu0 %v683
        %1006 = vmatpush.msra.mxu0 %v677
        %1007 = vmatpush.msra.mxu0 %v671
        %1008 = vmatpush.msra.mxu0 %v665
        %1009 = vmatmul.f32.gmra.mxu0 %v658
        %v1010 = vpop.f32.mrf.mxu0
        %v1011 = vadd.f32 0.0, %v1010
        %1012 = vmatmul.f32.gmra.mxu0 %v660
        %v1013 = vpop.f32.mrf.mxu0
        %v1014 = vadd.f32 0.0, %v1013
        %1015 = vdwg.mxu0
        %1016 = vmatpush.msra.mxu0 %v851
        %1017 = vmatpush.msra.mxu0 %v845
        %1018 = vmatpush.msra.mxu0 %v839
        %1019 = vmatpush.msra.mxu0 %v833
        %1020 = vmatpush.msra.mxu0 %v827
        %1021 = vmatpush.msra.mxu0 %v821
        %1022 = vmatpush.msra.mxu0 %v815
        %1023 = vmatpush.msra.mxu0 %v809
        %1024 = vmatpush.msra.mxu0 %v803
        %1025 = vmatpush.msra.mxu0 %v797
        %1026 = vmatpush.msra.mxu0 %v791
        %1027 = vmatpush.msra.mxu0 %v785
        %1028 = vmatpush.msra.mxu0 %v779
        %1029 = vmatpush.msra.mxu0 %v773
        %1030 = vmatpush.msra.mxu0 %v767
        %1031 = vmatpush.msra.mxu0 %v761
        %1032 = vmatmul.f32.gmra.mxu0 %v659
        %v1033 = vpop.f32.mrf.mxu0
        %v1034 = vadd.f32 %v1011, %v1033
        %1035 = vmatmul.f32.gmra.mxu0 %v661
        %v1036 = vpop.f32.mrf.mxu0
        %v1037 = vadd.f32 %v1014, %v1036
        %1038 = vdwg.mxu0
        %1039 = vmatpush.msra.mxu0 %v756
        %1040 = vmatpush.msra.mxu0 %v750
        %1041 = vmatpush.msra.mxu0 %v744
        %1042 = vmatpush.msra.mxu0 %v738
        %1043 = vmatpush.msra.mxu0 %v732
        %1044 = vmatpush.msra.mxu0 %v726
        %1045 = vmatpush.msra.mxu0 %v720
        %1046 = vmatpush.msra.mxu0 %v714
        %1047 = vmatpush.msra.mxu0 %v708
        %1048 = vmatpush.msra.mxu0 %v702
        %1049 = vmatpush.msra.mxu0 %v696
        %1050 = vmatpush.msra.mxu0 %v690
        %1051 = vmatpush.msra.mxu0 %v684
        %1052 = vmatpush.msra.mxu0 %v678
        %1053 = vmatpush.msra.mxu0 %v672
        %1054 = vmatpush.msra.mxu0 %v666
        %1055 = vmatmul.f32.gmra.mxu0 %v658
        %v1056 = vpop.f32.mrf.mxu0
        %v1057 = vadd.f32 0.0, %v1056
        %1058 = vmatmul.f32.gmra.mxu0 %v660
        %v1059 = vpop.f32.mrf.mxu0
        %v1060 = vadd.f32 0.0, %v1059
        %1061 = vdwg.mxu0
        %1062 = vmatpush.msra.mxu0 %v852
        %1063 = vmatpush.msra.mxu0 %v846
        %1064 = vmatpush.msra.mxu0 %v840
        %1065 = vmatpush.msra.mxu0 %v834
        %1066 = vmatpush.msra.mxu0 %v828
        %1067 = vmatpush.msra.mxu0 %v822
        %1068 = vmatpush.msra.mxu0 %v816
        %1069 = vmatpush.msra.mxu0 %v810
        %1070 = vmatpush.msra.mxu0 %v804
        %1071 = vmatpush.msra.mxu0 %v798
        %1072 = vmatpush.msra.mxu0 %v792
        %1073 = vmatpush.msra.mxu0 %v786
        %1074 = vmatpush.msra.mxu0 %v780
        %1075 = vmatpush.msra.mxu0 %v774
        %1076 = vmatpush.msra.mxu0 %v768
        %1077 = vmatpush.msra.mxu0 %v762
        %1078 = vmatmul.f32.gmra.mxu0 %v659
        %v1079 = vpop.f32.mrf.mxu0
        %v1080 = vadd.f32 %v1057, %v1079
        %1081 = vmatmul.f32.gmra.mxu0 %v661
        %v1082 = vpop.f32.mrf.mxu0
        %v1083 = vadd.f32 %v1060, %v1082
        %1084 = vdwg.mxu0
        %1085 = vmatpush.msra.mxu0 %v757
        %1086 = vmatpush.msra.mxu0 %v751
        %1087 = vmatpush.msra.mxu0 %v745
        %1088 = vmatpush.msra.mxu0 %v739
        %1089 = vmatpush.msra.mxu0 %v733
        %1090 = vmatpush.msra.mxu0 %v727
        %1091 = vmatpush.msra.mxu0 %v721
        %1092 = vmatpush.msra.mxu0 %v715
        %1093 = vmatpush.msra.mxu0 %v709
        %1094 = vmatpush.msra.mxu0 %v703
        %1095 = vmatpush.msra.mxu0 %v697
        %1096 = vmatpush.msra.mxu0 %v691
        %1097 = vmatpush.msra.mxu0 %v685
        %1098 = vmatpush.msra.mxu0 %v679
        %1099 = vmatpush.msra.mxu0 %v673
        %1100 = vmatpush.msra.mxu0 %v667
        %1101 = vmatmul.f32.gmra.mxu0 %v658
        %v1102 = vpop.f32.mrf.mxu0
        %v1103 = vadd.f32 0.0, %v1102
        %1104 = vmatmul.f32.gmra.mxu0 %v660
        %v1105 = vpop.f32.mrf.mxu0
        %v1106 = vadd.f32 0.0, %v1105
        %1107 = vdwg.mxu0
        %1108 = vmatpush.msra.mxu0 %v853
        %1109 = vmatpush.msra.mxu0 %v847
        %1110 = vmatpush.msra.mxu0 %v841
        %1111 = vmatpush.msra.mxu0 %v835
        %1112 = vmatpush.msra.mxu0 %v829
        %1113 = vmatpush.msra.mxu0 %v823
        %1114 = vmatpush.msra.mxu0 %v817
        %1115 = vmatpush.msra.mxu0 %v811
        %1116 = vmatpush.msra.mxu0 %v805
        %1117 = vmatpush.msra.mxu0 %v799
        %1118 = vmatpush.msra.mxu0 %v793
        %1119 = vmatpush.msra.mxu0 %v787
        %1120 = vmatpush.msra.mxu0 %v781
        %1121 = vmatpush.msra.mxu0 %v775
        %1122 = vmatpush.msra.mxu0 %v769
        %1123 = vmatpush.msra.mxu0 %v763
        %1124 = vmatmul.f32.gmra.mxu0 %v659
        %v1125 = vpop.f32.mrf.mxu0
        %v1126 = vadd.f32 %v1103, %v1125
        %1127 = vmatmul.f32.gmra.mxu0 %v661
        %v1128 = vpop.f32.mrf.mxu0
        %v1129 = vadd.f32 %v1106, %v1128
        %1130 = vdwg.mxu0
        %v1131 = vrot.slane %v896, 7
        %v1132 = vrot.slane %v942, 7
        %v1133 = vrot.slane %v899, 7
        %v1134 = vrot.slane %v945, 7
        %v1135 = vsel %vm621, %v1131, %v1133
        %v1136 = vsel %vm621, %v1132, %v1134
        %v1137 = vsel %vm621, %v1133, %v1131
        %v1138 = vsel %vm621, %v1134, %v1132
        %v1139 = vsel %vm615, 0.0, %v1137
        %v1140 = vsel %vm615, 0.0, %v1138
        %v1141 = vsel %vm616, 0.0, %v1135
        %v1142 = vsel %vm616, 0.0, %v1136
        %v1143 = vrot.slane %v1080, 1
        %v1144 = vrot.slane %v1126, 1
        %v1145 = vrot.slane %v1083, 1
        %v1146 = vrot.slane %v1129, 1
        %v1147 = vsel %vm636, %v1143, %v1145
        %v1148 = vsel %vm636, %v1144, %v1146
        %v1149 = vsel %vm636, %v1145, %v1143
        %v1150 = vsel %vm636, %v1146, %v1144
        %v1151 = vsel %vm630, 0.0, %v1147
        %v1152 = vsel %vm630, 0.0, %v1148
        %v1153 = vsel %vm631, 0.0, %v1149
        %v1154 = vsel %vm631, 0.0, %v1150
        %v1155 = vadd.f32 %v1139, %v988
        %v1156 = vadd.f32 %v1140, %v1034
        %v1157 = vadd.f32 %v1141, %v991
        %v1158 = vadd.f32 %v1142, %v1037
        %v1159 = vadd.f32 %v1155, %v1151
        %v1160 = vadd.f32 %v1156, %v1152
        %v1161 = vadd.f32 %v1157, %v1153
        %v1162 = vadd.f32 %v1158, %v1154
        %v1164 = vperm.slane %v854, 0
        %v1165 = vperm.slane %v854, 1
        %v1168 = vadd.f32 %v1159, %v1164
        %v1169 = vadd.f32 %v1160, %v1165
        %v1170 = vadd.f32 %v1161, %v1164
        %v1171 = vadd.f32 %v1162, %v1165
        %s1172 = scalar_lea.vmem [#allocation6], 1536
        %v1173 = vld [vmem:[%s1172] sm:$0xff]
        %v1174 = vld [vmem:[%s1172 + $0x8] sm:$0xff]
        %v1175 = vld [vmem:[%s1172 + $0x10] sm:$0xff]
        %v1176 = vld [vmem:[%s1172 + $0x18] sm:$0xff]
        %v1177 = vld [vmem:[%s1172 + $0x20] sm:$0xff]
        %v1178 = vld [vmem:[%s1172 + $0x28] sm:$0xff]
        %v1179 = vld [vmem:[%s1172 + $0x30] sm:$0xff]
        %v1180 = vld [vmem:[%s1172 + $0x38] sm:$0xff]
        %v1181 = vld [vmem:[%s1172 + $0x40] sm:$0xff]
        %v1182 = vld [vmem:[%s1172 + $0x48] sm:$0xff]
        %v1183 = vld [vmem:[%s1172 + $0x50] sm:$0xff]
        %v1184 = vld [vmem:[%s1172 + $0x58] sm:$0xff]
        %v1185 = vld [vmem:[%s1172 + $0x60] sm:$0xff]
        %v1186 = vld [vmem:[%s1172 + $0x68] sm:$0xff]
        %v1187 = vld [vmem:[%s1172 + $0x70] sm:$0xff]
        %v1188 = vld [vmem:[%s1172 + $0x78] sm:$0xff]
        %v1189 = vld [vmem:[%s1172 + $0x80] sm:$0xff]
        %v1190 = vld [vmem:[%s1172 + $0x88] sm:$0xff]
        %v1191 = vld [vmem:[%s1172 + $0x90] sm:$0xff]
        %v1192 = vld [vmem:[%s1172 + $0x98] sm:$0xff]
        %v1193 = vld [vmem:[%s1172 + $0xa0] sm:$0xff]
        %v1194 = vld [vmem:[%s1172 + $0xa8] sm:$0xff]
        %v1195 = vld [vmem:[%s1172 + $0xb0] sm:$0xff]
        %v1196 = vld [vmem:[%s1172 + $0xb8] sm:$0xff]
        %v1197 = vld [vmem:[%s1172 + $0xc0] sm:$0xff]
        %v1198 = vld [vmem:[%s1172 + $0xc8] sm:$0xff]
        %v1199 = vld [vmem:[%s1172 + $0xd0] sm:$0xff]
        %v1200 = vld [vmem:[%s1172 + $0xd8] sm:$0xff]
        %v1201 = vld [vmem:[%s1172 + $0xe0] sm:$0xff]
        %v1202 = vld [vmem:[%s1172 + $0xe8] sm:$0xff]
        %v1203 = vld [vmem:[%s1172 + $0xf0] sm:$0xff]
        %v1204 = vld [vmem:[%s1172 + $0xf8] sm:$0xff]
        %v1205 = vld [vmem:[%s1172 + $0x100] sm:$0xff]
        %v1206 = vld [vmem:[%s1172 + $0x108] sm:$0xff]
        %v1207 = vld [vmem:[%s1172 + $0x110] sm:$0xff]
        %v1208 = vld [vmem:[%s1172 + $0x118] sm:$0xff]
        %v1209 = vld [vmem:[%s1172 + $0x120] sm:$0xff]
        %v1210 = vld [vmem:[%s1172 + $0x128] sm:$0xff]
        %v1211 = vld [vmem:[%s1172 + $0x130] sm:$0xff]
        %v1212 = vld [vmem:[%s1172 + $0x138] sm:$0xff]
        %v1213 = vld [vmem:[%s1172 + $0x140] sm:$0xff]
        %v1214 = vld [vmem:[%s1172 + $0x148] sm:$0xff]
        %v1215 = vld [vmem:[%s1172 + $0x150] sm:$0xff]
        %v1216 = vld [vmem:[%s1172 + $0x158] sm:$0xff]
        %v1217 = vld [vmem:[%s1172 + $0x160] sm:$0xff]
        %v1218 = vld [vmem:[%s1172 + $0x168] sm:$0xff]
        %v1219 = vld [vmem:[%s1172 + $0x170] sm:$0xff]
        %v1220 = vld [vmem:[%s1172 + $0x178] sm:$0xff]
        %v1221 = vld [vmem:[%s1172 + $0x180] sm:$0xff]
        %v1222 = vld [vmem:[%s1172 + $0x188] sm:$0xff]
        %v1223 = vld [vmem:[%s1172 + $0x190] sm:$0xff]
        %v1224 = vld [vmem:[%s1172 + $0x198] sm:$0xff]
        %v1225 = vld [vmem:[%s1172 + $0x1a0] sm:$0xff]
        %v1226 = vld [vmem:[%s1172 + $0x1a8] sm:$0xff]
        %v1227 = vld [vmem:[%s1172 + $0x1b0] sm:$0xff]
        %v1228 = vld [vmem:[%s1172 + $0x1b8] sm:$0xff]
        %v1229 = vld [vmem:[%s1172 + $0x1c0] sm:$0xff]
        %v1230 = vld [vmem:[%s1172 + $0x1c8] sm:$0xff]
        %v1231 = vld [vmem:[%s1172 + $0x1d0] sm:$0xff]
        %v1232 = vld [vmem:[%s1172 + $0x1d8] sm:$0xff]
        %v1233 = vld [vmem:[%s1172 + $0x1e0] sm:$0xff]
        %v1234 = vld [vmem:[%s1172 + $0x1e8] sm:$0xff]
        %v1235 = vld [vmem:[%s1172 + $0x1f0] sm:$0xff]
        %v1236 = vld [vmem:[%s1172 + $0x1f8] sm:$0xff]
        %v1237 = vld [vmem:[%s1172 + $0x200] sm:$0xff]
        %v1238 = vld [vmem:[%s1172 + $0x208] sm:$0xff]
        %v1239 = vld [vmem:[%s1172 + $0x210] sm:$0xff]
        %v1240 = vld [vmem:[%s1172 + $0x218] sm:$0xff]
        %v1241 = vld [vmem:[%s1172 + $0x220] sm:$0xff]
        %v1242 = vld [vmem:[%s1172 + $0x228] sm:$0xff]
        %v1243 = vld [vmem:[%s1172 + $0x230] sm:$0xff]
        %v1244 = vld [vmem:[%s1172 + $0x238] sm:$0xff]
        %v1245 = vld [vmem:[%s1172 + $0x240] sm:$0xff]
        %v1246 = vld [vmem:[%s1172 + $0x248] sm:$0xff]
        %v1247 = vld [vmem:[%s1172 + $0x250] sm:$0xff]
        %v1248 = vld [vmem:[%s1172 + $0x258] sm:$0xff]
        %v1249 = vld [vmem:[%s1172 + $0x260] sm:$0xff]
        %v1250 = vld [vmem:[%s1172 + $0x268] sm:$0xff]
        %v1251 = vld [vmem:[%s1172 + $0x270] sm:$0xff]
        %v1252 = vld [vmem:[%s1172 + $0x278] sm:$0xff]
        %v1253 = vld [vmem:[%s1172 + $0x280] sm:$0xff]
        %v1254 = vld [vmem:[%s1172 + $0x288] sm:$0xff]
        %v1255 = vld [vmem:[%s1172 + $0x290] sm:$0xff]
        %v1256 = vld [vmem:[%s1172 + $0x298] sm:$0xff]
        %v1257 = vld [vmem:[%s1172 + $0x2a0] sm:$0xff]
        %v1258 = vld [vmem:[%s1172 + $0x2a8] sm:$0xff]
        %v1259 = vld [vmem:[%s1172 + $0x2b0] sm:$0xff]
        %v1260 = vld [vmem:[%s1172 + $0x2b8] sm:$0xff]
        %v1261 = vld [vmem:[%s1172 + $0x2c0] sm:$0xff]
        %v1262 = vld [vmem:[%s1172 + $0x2c8] sm:$0xff]
        %v1263 = vld [vmem:[%s1172 + $0x2d0] sm:$0xff]
        %v1264 = vld [vmem:[%s1172 + $0x2d8] sm:$0xff]
        %v1265 = vld [vmem:[%s1172 + $0x2e0] sm:$0xff]
        %v1266 = vld [vmem:[%s1172 + $0x2e8] sm:$0xff]
        %v1267 = vld [vmem:[%s1172 + $0x2f0] sm:$0xff]
        %v1268 = vld [vmem:[%s1172 + $0x2f8] sm:$0xff]
        %v1269 = vld [vmem:[%s1172 + $0x300] sm:$0xff]
        %v1270 = vld [vmem:[%s1172 + $0x308] sm:$0xff]
        %v1271 = vld [vmem:[%s1172 + $0x310] sm:$0xff]
        %v1272 = vld [vmem:[%s1172 + $0x318] sm:$0xff]
        %v1273 = vld [vmem:[%s1172 + $0x320] sm:$0xff]
        %v1274 = vld [vmem:[%s1172 + $0x328] sm:$0xff]
        %v1275 = vld [vmem:[%s1172 + $0x330] sm:$0xff]
        %v1276 = vld [vmem:[%s1172 + $0x338] sm:$0xff]
        %v1277 = vld [vmem:[%s1172 + $0x340] sm:$0xff]
        %v1278 = vld [vmem:[%s1172 + $0x348] sm:$0xff]
        %v1279 = vld [vmem:[%s1172 + $0x350] sm:$0xff]
        %v1280 = vld [vmem:[%s1172 + $0x358] sm:$0xff]
        %v1281 = vld [vmem:[%s1172 + $0x360] sm:$0xff]
        %v1282 = vld [vmem:[%s1172 + $0x368] sm:$0xff]
        %v1283 = vld [vmem:[%s1172 + $0x370] sm:$0xff]
        %v1284 = vld [vmem:[%s1172 + $0x378] sm:$0xff]
        %v1285 = vld [vmem:[%s1172 + $0x380] sm:$0xff]
        %v1286 = vld [vmem:[%s1172 + $0x388] sm:$0xff]
        %v1287 = vld [vmem:[%s1172 + $0x390] sm:$0xff]
        %v1288 = vld [vmem:[%s1172 + $0x398] sm:$0xff]
        %v1289 = vld [vmem:[%s1172 + $0x3a0] sm:$0xff]
        %v1290 = vld [vmem:[%s1172 + $0x3a8] sm:$0xff]
        %v1291 = vld [vmem:[%s1172 + $0x3b0] sm:$0xff]
        %v1292 = vld [vmem:[%s1172 + $0x3b8] sm:$0xff]
        %v1293 = vld [vmem:[%s1172 + $0x3c0] sm:$0xff]
        %v1294 = vld [vmem:[%s1172 + $0x3c8] sm:$0xff]
        %v1295 = vld [vmem:[%s1172 + $0x3d0] sm:$0xff]
        %v1296 = vld [vmem:[%s1172 + $0x3d8] sm:$0xff]
        %v1297 = vld [vmem:[%s1172 + $0x3e0] sm:$0xff]
        %v1298 = vld [vmem:[%s1172 + $0x3e8] sm:$0xff]
        %v1299 = vld [vmem:[%s1172 + $0x3f0] sm:$0xff]
        %v1300 = vld [vmem:[%s1172 + $0x3f8] sm:$0xff]
        %v1301 = vld [vmem:[%s1172 + $0x400] sm:$0xff]
        %v1302 = vld [vmem:[%s1172 + $0x408] sm:$0xff]
        %v1303 = vld [vmem:[%s1172 + $0x410] sm:$0xff]
        %v1304 = vld [vmem:[%s1172 + $0x418] sm:$0xff]
        %v1305 = vld [vmem:[%s1172 + $0x420] sm:$0xff]
        %v1306 = vld [vmem:[%s1172 + $0x428] sm:$0xff]
        %v1307 = vld [vmem:[%s1172 + $0x430] sm:$0xff]
        %v1308 = vld [vmem:[%s1172 + $0x438] sm:$0xff]
        %v1309 = vld [vmem:[%s1172 + $0x440] sm:$0xff]
        %v1310 = vld [vmem:[%s1172 + $0x448] sm:$0xff]
        %v1311 = vld [vmem:[%s1172 + $0x450] sm:$0xff]
        %v1312 = vld [vmem:[%s1172 + $0x458] sm:$0xff]
        %v1313 = vld [vmem:[%s1172 + $0x460] sm:$0xff]
        %v1314 = vld [vmem:[%s1172 + $0x468] sm:$0xff]
        %v1315 = vld [vmem:[%s1172 + $0x470] sm:$0xff]
        %v1316 = vld [vmem:[%s1172 + $0x478] sm:$0xff]
        %v1317 = vld [vmem:[%s1172 + $0x480] sm:$0xff]
        %v1318 = vld [vmem:[%s1172 + $0x488] sm:$0xff]
        %v1319 = vld [vmem:[%s1172 + $0x490] sm:$0xff]
        %v1320 = vld [vmem:[%s1172 + $0x498] sm:$0xff]
        %v1321 = vld [vmem:[%s1172 + $0x4a0] sm:$0xff]
        %v1322 = vld [vmem:[%s1172 + $0x4a8] sm:$0xff]
        %v1323 = vld [vmem:[%s1172 + $0x4b0] sm:$0xff]
        %v1324 = vld [vmem:[%s1172 + $0x4b8] sm:$0xff]
        %v1325 = vld [vmem:[%s1172 + $0x4c0] sm:$0xff]
        %v1326 = vld [vmem:[%s1172 + $0x4c8] sm:$0xff]
        %v1327 = vld [vmem:[%s1172 + $0x4d0] sm:$0xff]
        %v1328 = vld [vmem:[%s1172 + $0x4d8] sm:$0xff]
        %v1329 = vld [vmem:[%s1172 + $0x4e0] sm:$0xff]
        %v1330 = vld [vmem:[%s1172 + $0x4e8] sm:$0xff]
        %v1331 = vld [vmem:[%s1172 + $0x4f0] sm:$0xff]
        %v1332 = vld [vmem:[%s1172 + $0x4f8] sm:$0xff]
        %v1333 = vld [vmem:[%s1172 + $0x500] sm:$0xff]
        %v1334 = vld [vmem:[%s1172 + $0x508] sm:$0xff]
        %v1335 = vld [vmem:[%s1172 + $0x510] sm:$0xff]
        %v1336 = vld [vmem:[%s1172 + $0x518] sm:$0xff]
        %v1337 = vld [vmem:[%s1172 + $0x520] sm:$0xff]
        %v1338 = vld [vmem:[%s1172 + $0x528] sm:$0xff]
        %v1339 = vld [vmem:[%s1172 + $0x530] sm:$0xff]
        %v1340 = vld [vmem:[%s1172 + $0x538] sm:$0xff]
        %v1341 = vld [vmem:[%s1172 + $0x540] sm:$0xff]
        %v1342 = vld [vmem:[%s1172 + $0x548] sm:$0xff]
        %v1343 = vld [vmem:[%s1172 + $0x550] sm:$0xff]
        %v1344 = vld [vmem:[%s1172 + $0x558] sm:$0xff]
        %v1345 = vld [vmem:[%s1172 + $0x560] sm:$0xff]
        %v1346 = vld [vmem:[%s1172 + $0x568] sm:$0xff]
        %v1347 = vld [vmem:[%s1172 + $0x570] sm:$0xff]
        %v1348 = vld [vmem:[%s1172 + $0x578] sm:$0xff]
        %v1349 = vld [vmem:[%s1172 + $0x580] sm:$0xff]
        %v1350 = vld [vmem:[%s1172 + $0x588] sm:$0xff]
        %v1351 = vld [vmem:[%s1172 + $0x590] sm:$0xff]
        %v1352 = vld [vmem:[%s1172 + $0x598] sm:$0xff]
        %v1353 = vld [vmem:[%s1172 + $0x5a0] sm:$0xff]
        %v1354 = vld [vmem:[%s1172 + $0x5a8] sm:$0xff]
        %v1355 = vld [vmem:[%s1172 + $0x5b0] sm:$0xff]
        %v1356 = vld [vmem:[%s1172 + $0x5b8] sm:$0xff]
        %v1357 = vld [vmem:[%s1172 + $0x5c0] sm:$0xff]
        %v1358 = vld [vmem:[%s1172 + $0x5c8] sm:$0xff]
        %v1359 = vld [vmem:[%s1172 + $0x5d0] sm:$0xff]
        %v1360 = vld [vmem:[%s1172 + $0x5d8] sm:$0xff]
        %v1361 = vld [vmem:[%s1172 + $0x5e0] sm:$0xff]
        %v1362 = vld [vmem:[%s1172 + $0x5e8] sm:$0xff]
        %v1363 = vld [vmem:[%s1172 + $0x5f0] sm:$0xff]
        %v1364 = vld [vmem:[%s1172 + $0x5f8] sm:$0xff]
        %s1365 = scalar_lea.vmem [#allocation7], 2
        %v1366 = vld [vmem:[%s1365] sm:$0x3]
        %1367 = vmatpush.msra.mxu0 %v1263
        %1368 = vmatpush.msra.mxu0 %v1257
        %1369 = vmatpush.msra.mxu0 %v1251
        %1370 = vmatpush.msra.mxu0 %v1245
        %1371 = vmatpush.msra.mxu0 %v1239
        %1372 = vmatpush.msra.mxu0 %v1233
        %1373 = vmatpush.msra.mxu0 %v1227
        %1374 = vmatpush.msra.mxu0 %v1221
        %1375 = vmatpush.msra.mxu0 %v1215
        %1376 = vmatpush.msra.mxu0 %v1209
        %1377 = vmatpush.msra.mxu0 %v1203
        %1378 = vmatpush.msra.mxu0 %v1197
        %1379 = vmatpush.msra.mxu0 %v1191
        %1380 = vmatpush.msra.mxu0 %v1185
        %1381 = vmatpush.msra.mxu0 %v1179
        %1382 = vmatpush.msra.mxu0 %v1173
        %1383 = vmatmul.f32.gmra.mxu0 %v1168
        %v1384 = vpop.f32.mrf.mxu0
        %v1385 = vadd.f32 0.0, %v1384
        %1386 = vmatmul.f32.gmra.mxu0 %v1170
        %v1387 = vpop.f32.mrf.mxu0
        %v1388 = vadd.f32 0.0, %v1387
        %1389 = vdwg.mxu0
        %1390 = vmatpush.msra.mxu0 %v1359
        %1391 = vmatpush.msra.mxu0 %v1353
        %1392 = vmatpush.msra.mxu0 %v1347
        %1393 = vmatpush.msra.mxu0 %v1341
        %1394 = vmatpush.msra.mxu0 %v1335
        %1395 = vmatpush.msra.mxu0 %v1329
        %1396 = vmatpush.msra.mxu0 %v1323
        %1397 = vmatpush.msra.mxu0 %v1317
        %1398 = vmatpush.msra.mxu0 %v1311
        %1399 = vmatpush.msra.mxu0 %v1305
        %1400 = vmatpush.msra.mxu0 %v1299
        %1401 = vmatpush.msra.mxu0 %v1293
        %1402 = vmatpush.msra.mxu0 %v1287
        %1403 = vmatpush.msra.mxu0 %v1281
        %1404 = vmatpush.msra.mxu0 %v1275
        %1405 = vmatpush.msra.mxu0 %v1269
        %1406 = vmatmul.f32.gmra.mxu0 %v1169
        %v1407 = vpop.f32.mrf.mxu0
        %v1408 = vadd.f32 %v1385, %v1407
        %1409 = vmatmul.f32.gmra.mxu0 %v1171
        %v1410 = vpop.f32.mrf.mxu0
        %v1411 = vadd.f32 %v1388, %v1410
        %1412 = vdwg.mxu0
        %1413 = vmatpush.msra.mxu0 %v1264
        %1414 = vmatpush.msra.mxu0 %v1258
        %1415 = vmatpush.msra.mxu0 %v1252
        %1416 = vmatpush.msra.mxu0 %v1246
        %1417 = vmatpush.msra.mxu0 %v1240
        %1418 = vmatpush.msra.mxu0 %v1234
        %1419 = vmatpush.msra.mxu0 %v1228
        %1420 = vmatpush.msra.mxu0 %v1222
        %1421 = vmatpush.msra.mxu0 %v1216
        %1422 = vmatpush.msra.mxu0 %v1210
        %1423 = vmatpush.msra.mxu0 %v1204
        %1424 = vmatpush.msra.mxu0 %v1198
        %1425 = vmatpush.msra.mxu0 %v1192
        %1426 = vmatpush.msra.mxu0 %v1186
        %1427 = vmatpush.msra.mxu0 %v1180
        %1428 = vmatpush.msra.mxu0 %v1174
        %1429 = vmatmul.f32.gmra.mxu0 %v1168
        %v1430 = vpop.f32.mrf.mxu0
        %v1431 = vadd.f32 0.0, %v1430
        %1432 = vmatmul.f32.gmra.mxu0 %v1170
        %v1433 = vpop.f32.mrf.mxu0
        %v1434 = vadd.f32 0.0, %v1433
        %1435 = vdwg.mxu0
        %1436 = vmatpush.msra.mxu0 %v1360
        %1437 = vmatpush.msra.mxu0 %v1354
        %1438 = vmatpush.msra.mxu0 %v1348
        %1439 = vmatpush.msra.mxu0 %v1342
        %1440 = vmatpush.msra.mxu0 %v1336
        %1441 = vmatpush.msra.mxu0 %v1330
        %1442 = vmatpush.msra.mxu0 %v1324
        %1443 = vmatpush.msra.mxu0 %v1318
        %1444 = vmatpush.msra.mxu0 %v1312
        %1445 = vmatpush.msra.mxu0 %v1306
        %1446 = vmatpush.msra.mxu0 %v1300
        %1447 = vmatpush.msra.mxu0 %v1294
        %1448 = vmatpush.msra.mxu0 %v1288
        %1449 = vmatpush.msra.mxu0 %v1282
        %1450 = vmatpush.msra.mxu0 %v1276
        %1451 = vmatpush.msra.mxu0 %v1270
        %1452 = vmatmul.f32.gmra.mxu0 %v1169
        %v1453 = vpop.f32.mrf.mxu0
        %v1454 = vadd.f32 %v1431, %v1453
        %1455 = vmatmul.f32.gmra.mxu0 %v1171
        %v1456 = vpop.f32.mrf.mxu0
        %v1457 = vadd.f32 %v1434, %v1456
        %1458 = vdwg.mxu0
        %1459 = vmatpush.msra.mxu0 %v1265
        %1460 = vmatpush.msra.mxu0 %v1259
        %1461 = vmatpush.msra.mxu0 %v1253
        %1462 = vmatpush.msra.mxu0 %v1247
        %1463 = vmatpush.msra.mxu0 %v1241
        %1464 = vmatpush.msra.mxu0 %v1235
        %1465 = vmatpush.msra.mxu0 %v1229
        %1466 = vmatpush.msra.mxu0 %v1223
        %1467 = vmatpush.msra.mxu0 %v1217
        %1468 = vmatpush.msra.mxu0 %v1211
        %1469 = vmatpush.msra.mxu0 %v1205
        %1470 = vmatpush.msra.mxu0 %v1199
        %1471 = vmatpush.msra.mxu0 %v1193
        %1472 = vmatpush.msra.mxu0 %v1187
        %1473 = vmatpush.msra.mxu0 %v1181
        %1474 = vmatpush.msra.mxu0 %v1175
        %1475 = vmatmul.f32.gmra.mxu0 %v1168
        %v1476 = vpop.f32.mrf.mxu0
        %v1477 = vadd.f32 0.0, %v1476
        %1478 = vmatmul.f32.gmra.mxu0 %v1170
        %v1479 = vpop.f32.mrf.mxu0
        %v1480 = vadd.f32 0.0, %v1479
        %1481 = vdwg.mxu0
        %1482 = vmatpush.msra.mxu0 %v1361
        %1483 = vmatpush.msra.mxu0 %v1355
        %1484 = vmatpush.msra.mxu0 %v1349
        %1485 = vmatpush.msra.mxu0 %v1343
        %1486 = vmatpush.msra.mxu0 %v1337
        %1487 = vmatpush.msra.mxu0 %v1331
        %1488 = vmatpush.msra.mxu0 %v1325
        %1489 = vmatpush.msra.mxu0 %v1319
        %1490 = vmatpush.msra.mxu0 %v1313
        %1491 = vmatpush.msra.mxu0 %v1307
        %1492 = vmatpush.msra.mxu0 %v1301
        %1493 = vmatpush.msra.mxu0 %v1295
        %1494 = vmatpush.msra.mxu0 %v1289
        %1495 = vmatpush.msra.mxu0 %v1283
        %1496 = vmatpush.msra.mxu0 %v1277
        %1497 = vmatpush.msra.mxu0 %v1271
        %1498 = vmatmul.f32.gmra.mxu0 %v1169
        %v1499 = vpop.f32.mrf.mxu0
        %v1500 = vadd.f32 %v1477, %v1499
        %1501 = vmatmul.f32.gmra.mxu0 %v1171
        %v1502 = vpop.f32.mrf.mxu0
        %v1503 = vadd.f32 %v1480, %v1502
        %1504 = vdwg.mxu0
        %1505 = vmatpush.msra.mxu0 %v1266
        %1506 = vmatpush.msra.mxu0 %v1260
        %1507 = vmatpush.msra.mxu0 %v1254
        %1508 = vmatpush.msra.mxu0 %v1248
        %1509 = vmatpush.msra.mxu0 %v1242
        %1510 = vmatpush.msra.mxu0 %v1236
        %1511 = vmatpush.msra.mxu0 %v1230
        %1512 = vmatpush.msra.mxu0 %v1224
        %1513 = vmatpush.msra.mxu0 %v1218
        %1514 = vmatpush.msra.mxu0 %v1212
        %1515 = vmatpush.msra.mxu0 %v1206
        %1516 = vmatpush.msra.mxu0 %v1200
        %1517 = vmatpush.msra.mxu0 %v1194
        %1518 = vmatpush.msra.mxu0 %v1188
        %1519 = vmatpush.msra.mxu0 %v1182
        %1520 = vmatpush.msra.mxu0 %v1176
        %1521 = vmatmul.f32.gmra.mxu0 %v1168
        %v1522 = vpop.f32.mrf.mxu0
        %v1523 = vadd.f32 0.0, %v1522
        %1524 = vmatmul.f32.gmra.mxu0 %v1170
        %v1525 = vpop.f32.mrf.mxu0
        %v1526 = vadd.f32 0.0, %v1525
        %1527 = vdwg.mxu0
        %1528 = vmatpush.msra.mxu0 %v1362
        %1529 = vmatpush.msra.mxu0 %v1356
        %1530 = vmatpush.msra.mxu0 %v1350
        %1531 = vmatpush.msra.mxu0 %v1344
        %1532 = vmatpush.msra.mxu0 %v1338
        %1533 = vmatpush.msra.mxu0 %v1332
        %1534 = vmatpush.msra.mxu0 %v1326
        %1535 = vmatpush.msra.mxu0 %v1320
        %1536 = vmatpush.msra.mxu0 %v1314
        %1537 = vmatpush.msra.mxu0 %v1308
        %1538 = vmatpush.msra.mxu0 %v1302
        %1539 = vmatpush.msra.mxu0 %v1296
        %1540 = vmatpush.msra.mxu0 %v1290
        %1541 = vmatpush.msra.mxu0 %v1284
        %1542 = vmatpush.msra.mxu0 %v1278
        %1543 = vmatpush.msra.mxu0 %v1272
        %1544 = vmatmul.f32.gmra.mxu0 %v1169
        %v1545 = vpop.f32.mrf.mxu0
        %v1546 = vadd.f32 %v1523, %v1545
        %1547 = vmatmul.f32.gmra.mxu0 %v1171
        %v1548 = vpop.f32.mrf.mxu0
        %v1549 = vadd.f32 %v1526, %v1548
        %1550 = vdwg.mxu0
        %1551 = vmatpush.msra.mxu0 %v1267
        %1552 = vmatpush.msra.mxu0 %v1261
        %1553 = vmatpush.msra.mxu0 %v1255
        %1554 = vmatpush.msra.mxu0 %v1249
        %1555 = vmatpush.msra.mxu0 %v1243
        %1556 = vmatpush.msra.mxu0 %v1237
        %1557 = vmatpush.msra.mxu0 %v1231
        %1558 = vmatpush.msra.mxu0 %v1225
        %1559 = vmatpush.msra.mxu0 %v1219
        %1560 = vmatpush.msra.mxu0 %v1213
        %1561 = vmatpush.msra.mxu0 %v1207
        %1562 = vmatpush.msra.mxu0 %v1201
        %1563 = vmatpush.msra.mxu0 %v1195
        %1564 = vmatpush.msra.mxu0 %v1189
        %1565 = vmatpush.msra.mxu0 %v1183
        %1566 = vmatpush.msra.mxu0 %v1177
        %1567 = vmatmul.f32.gmra.mxu0 %v1168
        %v1568 = vpop.f32.mrf.mxu0
        %v1569 = vadd.f32 0.0, %v1568
        %1570 = vmatmul.f32.gmra.mxu0 %v1170
        %v1571 = vpop.f32.mrf.mxu0
        %v1572 = vadd.f32 0.0, %v1571
        %1573 = vdwg.mxu0
        %1574 = vmatpush.msra.mxu0 %v1363
        %1575 = vmatpush.msra.mxu0 %v1357
        %1576 = vmatpush.msra.mxu0 %v1351
        %1577 = vmatpush.msra.mxu0 %v1345
        %1578 = vmatpush.msra.mxu0 %v1339
        %1579 = vmatpush.msra.mxu0 %v1333
        %1580 = vmatpush.msra.mxu0 %v1327
        %1581 = vmatpush.msra.mxu0 %v1321
        %1582 = vmatpush.msra.mxu0 %v1315
        %1583 = vmatpush.msra.mxu0 %v1309
        %1584 = vmatpush.msra.mxu0 %v1303
        %1585 = vmatpush.msra.mxu0 %v1297
        %1586 = vmatpush.msra.mxu0 %v1291
        %1587 = vmatpush.msra.mxu0 %v1285
        %1588 = vmatpush.msra.mxu0 %v1279
        %1589 = vmatpush.msra.mxu0 %v1273
        %1590 = vmatmul.f32.gmra.mxu0 %v1169
        %v1591 = vpop.f32.mrf.mxu0
        %v1592 = vadd.f32 %v1569, %v1591
        %1593 = vmatmul.f32.gmra.mxu0 %v1171
        %v1594 = vpop.f32.mrf.mxu0
        %v1595 = vadd.f32 %v1572, %v1594
        %1596 = vdwg.mxu0
        %1597 = vmatpush.msra.mxu0 %v1268
        %1598 = vmatpush.msra.mxu0 %v1262
        %1599 = vmatpush.msra.mxu0 %v1256
        %1600 = vmatpush.msra.mxu0 %v1250
        %1601 = vmatpush.msra.mxu0 %v1244
        %1602 = vmatpush.msra.mxu0 %v1238
        %1603 = vmatpush.msra.mxu0 %v1232
        %1604 = vmatpush.msra.mxu0 %v1226
        %1605 = vmatpush.msra.mxu0 %v1220
        %1606 = vmatpush.msra.mxu0 %v1214
        %1607 = vmatpush.msra.mxu0 %v1208
        %1608 = vmatpush.msra.mxu0 %v1202
        %1609 = vmatpush.msra.mxu0 %v1196
        %1610 = vmatpush.msra.mxu0 %v1190
        %1611 = vmatpush.msra.mxu0 %v1184
        %1612 = vmatpush.msra.mxu0 %v1178
        %1613 = vmatmul.f32.gmra.mxu0 %v1168
        %v1614 = vpop.f32.mrf.mxu0
        %v1615 = vadd.f32 0.0, %v1614
        %1616 = vmatmul.f32.gmra.mxu0 %v1170
        %v1617 = vpop.f32.mrf.mxu0
        %v1618 = vadd.f32 0.0, %v1617
        %1619 = vdwg.mxu0
        %1620 = vmatpush.msra.mxu0 %v1364
        %1621 = vmatpush.msra.mxu0 %v1358
        %1622 = vmatpush.msra.mxu0 %v1352
        %1623 = vmatpush.msra.mxu0 %v1346
        %1624 = vmatpush.msra.mxu0 %v1340
        %1625 = vmatpush.msra.mxu0 %v1334
        %1626 = vmatpush.msra.mxu0 %v1328
        %1627 = vmatpush.msra.mxu0 %v1322
        %1628 = vmatpush.msra.mxu0 %v1316
        %1629 = vmatpush.msra.mxu0 %v1310
        %1630 = vmatpush.msra.mxu0 %v1304
        %1631 = vmatpush.msra.mxu0 %v1298
        %1632 = vmatpush.msra.mxu0 %v1292
        %1633 = vmatpush.msra.mxu0 %v1286
        %1634 = vmatpush.msra.mxu0 %v1280
        %1635 = vmatpush.msra.mxu0 %v1274
        %1636 = vmatmul.f32.gmra.mxu0 %v1169
        %v1637 = vpop.f32.mrf.mxu0
        %v1638 = vadd.f32 %v1615, %v1637
        %1639 = vmatmul.f32.gmra.mxu0 %v1171
        %v1640 = vpop.f32.mrf.mxu0
        %v1641 = vadd.f32 %v1618, %v1640
        %1642 = vdwg.mxu0
        %v1643 = vrot.slane %v1408, 7
        %v1644 = vrot.slane %v1454, 7
        %v1645 = vrot.slane %v1411, 7
        %v1646 = vrot.slane %v1457, 7
        %v1647 = vsel %vm621, %v1643, %v1645
        %v1648 = vsel %vm621, %v1644, %v1646
        %v1649 = vsel %vm621, %v1645, %v1643
        %v1650 = vsel %vm621, %v1646, %v1644
        %v1651 = vsel %vm615, 0.0, %v1649
        %v1652 = vsel %vm615, 0.0, %v1650
        %v1653 = vsel %vm616, 0.0, %v1647
        %v1654 = vsel %vm616, 0.0, %v1648
        %v1655 = vrot.slane %v1592, 1
        %v1656 = vrot.slane %v1638, 1
        %v1657 = vrot.slane %v1595, 1
        %v1658 = vrot.slane %v1641, 1
        %v1659 = vsel %vm636, %v1655, %v1657
        %v1660 = vsel %vm636, %v1656, %v1658
        %v1661 = vsel %vm636, %v1657, %v1655
        %v1662 = vsel %vm636, %v1658, %v1656
        %v1663 = vsel %vm630, 0.0, %v1659
        %v1664 = vsel %vm630, 0.0, %v1660
        %v1665 = vsel %vm631, 0.0, %v1661
        %v1666 = vsel %vm631, 0.0, %v1662
        %v1667 = vadd.f32 %v1651, %v1500
        %v1668 = vadd.f32 %v1652, %v1546
        %v1669 = vadd.f32 %v1653, %v1503
        %v1670 = vadd.f32 %v1654, %v1549
        %v1671 = vadd.f32 %v1667, %v1663
        %v1672 = vadd.f32 %v1668, %v1664
        %v1673 = vadd.f32 %v1669, %v1665
        %v1674 = vadd.f32 %v1670, %v1666
        %v1676 = vperm.slane %v1366, 0
        %v1677 = vperm.slane %v1366, 1
        %v1680 = vadd.f32 %v1671, %v1676
        %v1681 = vadd.f32 %v1672, %v1677
        %v1682 = vadd.f32 %v1673, %v1676
        %v1683 = vadd.f32 %v1674, %v1677
        %s1684 = scalar_lea.vmem [#allocation6], 3072
        %v1685 = vld [vmem:[%s1684] sm:$0xff]
        %v1686 = vld [vmem:[%s1684 + $0x8] sm:$0xff]
        %v1687 = vld [vmem:[%s1684 + $0x10] sm:$0xff]
        %v1688 = vld [vmem:[%s1684 + $0x18] sm:$0xff]
        %v1689 = vld [vmem:[%s1684 + $0x20] sm:$0xff]
        %v1690 = vld [vmem:[%s1684 + $0x28] sm:$0xff]
        %v1691 = vld [vmem:[%s1684 + $0x30] sm:$0xff]
        %v1692 = vld [vmem:[%s1684 + $0x38] sm:$0xff]
        %v1693 = vld [vmem:[%s1684 + $0x40] sm:$0xff]
        %v1694 = vld [vmem:[%s1684 + $0x48] sm:$0xff]
        %v1695 = vld [vmem:[%s1684 + $0x50] sm:$0xff]
        %v1696 = vld [vmem:[%s1684 + $0x58] sm:$0xff]
        %v1697 = vld [vmem:[%s1684 + $0x60] sm:$0xff]
        %v1698 = vld [vmem:[%s1684 + $0x68] sm:$0xff]
        %v1699 = vld [vmem:[%s1684 + $0x70] sm:$0xff]
        %v1700 = vld [vmem:[%s1684 + $0x78] sm:$0xff]
        %v1701 = vld [vmem:[%s1684 + $0x80] sm:$0xff]
        %v1702 = vld [vmem:[%s1684 + $0x88] sm:$0xff]
        %v1703 = vld [vmem:[%s1684 + $0x90] sm:$0xff]
        %v1704 = vld [vmem:[%s1684 + $0x98] sm:$0xff]
        %v1705 = vld [vmem:[%s1684 + $0xa0] sm:$0xff]
        %v1706 = vld [vmem:[%s1684 + $0xa8] sm:$0xff]
        %v1707 = vld [vmem:[%s1684 + $0xb0] sm:$0xff]
        %v1708 = vld [vmem:[%s1684 + $0xb8] sm:$0xff]
        %v1709 = vld [vmem:[%s1684 + $0xc0] sm:$0xff]
        %v1710 = vld [vmem:[%s1684 + $0xc8] sm:$0xff]
        %v1711 = vld [vmem:[%s1684 + $0xd0] sm:$0xff]
        %v1712 = vld [vmem:[%s1684 + $0xd8] sm:$0xff]
        %v1713 = vld [vmem:[%s1684 + $0xe0] sm:$0xff]
        %v1714 = vld [vmem:[%s1684 + $0xe8] sm:$0xff]
        %v1715 = vld [vmem:[%s1684 + $0xf0] sm:$0xff]
        %v1716 = vld [vmem:[%s1684 + $0xf8] sm:$0xff]
        %v1717 = vld [vmem:[%s1684 + $0x100] sm:$0xff]
        %v1718 = vld [vmem:[%s1684 + $0x108] sm:$0xff]
        %v1719 = vld [vmem:[%s1684 + $0x110] sm:$0xff]
        %v1720 = vld [vmem:[%s1684 + $0x118] sm:$0xff]
        %v1721 = vld [vmem:[%s1684 + $0x120] sm:$0xff]
        %v1722 = vld [vmem:[%s1684 + $0x128] sm:$0xff]
        %v1723 = vld [vmem:[%s1684 + $0x130] sm:$0xff]
        %v1724 = vld [vmem:[%s1684 + $0x138] sm:$0xff]
        %v1725 = vld [vmem:[%s1684 + $0x140] sm:$0xff]
        %v1726 = vld [vmem:[%s1684 + $0x148] sm:$0xff]
        %v1727 = vld [vmem:[%s1684 + $0x150] sm:$0xff]
        %v1728 = vld [vmem:[%s1684 + $0x158] sm:$0xff]
        %v1729 = vld [vmem:[%s1684 + $0x160] sm:$0xff]
        %v1730 = vld [vmem:[%s1684 + $0x168] sm:$0xff]
        %v1731 = vld [vmem:[%s1684 + $0x170] sm:$0xff]
        %v1732 = vld [vmem:[%s1684 + $0x178] sm:$0xff]
        %v1733 = vld [vmem:[%s1684 + $0x180] sm:$0xff]
        %v1734 = vld [vmem:[%s1684 + $0x188] sm:$0xff]
        %v1735 = vld [vmem:[%s1684 + $0x190] sm:$0xff]
        %v1736 = vld [vmem:[%s1684 + $0x198] sm:$0xff]
        %v1737 = vld [vmem:[%s1684 + $0x1a0] sm:$0xff]
        %v1738 = vld [vmem:[%s1684 + $0x1a8] sm:$0xff]
        %v1739 = vld [vmem:[%s1684 + $0x1b0] sm:$0xff]
        %v1740 = vld [vmem:[%s1684 + $0x1b8] sm:$0xff]
        %v1741 = vld [vmem:[%s1684 + $0x1c0] sm:$0xff]
        %v1742 = vld [vmem:[%s1684 + $0x1c8] sm:$0xff]
        %v1743 = vld [vmem:[%s1684 + $0x1d0] sm:$0xff]
        %v1744 = vld [vmem:[%s1684 + $0x1d8] sm:$0xff]
        %v1745 = vld [vmem:[%s1684 + $0x1e0] sm:$0xff]
        %v1746 = vld [vmem:[%s1684 + $0x1e8] sm:$0xff]
        %v1747 = vld [vmem:[%s1684 + $0x1f0] sm:$0xff]
        %v1748 = vld [vmem:[%s1684 + $0x1f8] sm:$0xff]
        %v1749 = vld [vmem:[%s1684 + $0x200] sm:$0xff]
        %v1750 = vld [vmem:[%s1684 + $0x208] sm:$0xff]
        %v1751 = vld [vmem:[%s1684 + $0x210] sm:$0xff]
        %v1752 = vld [vmem:[%s1684 + $0x218] sm:$0xff]
        %v1753 = vld [vmem:[%s1684 + $0x220] sm:$0xff]
        %v1754 = vld [vmem:[%s1684 + $0x228] sm:$0xff]
        %v1755 = vld [vmem:[%s1684 + $0x230] sm:$0xff]
        %v1756 = vld [vmem:[%s1684 + $0x238] sm:$0xff]
        %v1757 = vld [vmem:[%s1684 + $0x240] sm:$0xff]
        %v1758 = vld [vmem:[%s1684 + $0x248] sm:$0xff]
        %v1759 = vld [vmem:[%s1684 + $0x250] sm:$0xff]
        %v1760 = vld [vmem:[%s1684 + $0x258] sm:$0xff]
        %v1761 = vld [vmem:[%s1684 + $0x260] sm:$0xff]
        %v1762 = vld [vmem:[%s1684 + $0x268] sm:$0xff]
        %v1763 = vld [vmem:[%s1684 + $0x270] sm:$0xff]
        %v1764 = vld [vmem:[%s1684 + $0x278] sm:$0xff]
        %v1765 = vld [vmem:[%s1684 + $0x280] sm:$0xff]
        %v1766 = vld [vmem:[%s1684 + $0x288] sm:$0xff]
        %v1767 = vld [vmem:[%s1684 + $0x290] sm:$0xff]
        %v1768 = vld [vmem:[%s1684 + $0x298] sm:$0xff]
        %v1769 = vld [vmem:[%s1684 + $0x2a0] sm:$0xff]
        %v1770 = vld [vmem:[%s1684 + $0x2a8] sm:$0xff]
        %v1771 = vld [vmem:[%s1684 + $0x2b0] sm:$0xff]
        %v1772 = vld [vmem:[%s1684 + $0x2b8] sm:$0xff]
        %v1773 = vld [vmem:[%s1684 + $0x2c0] sm:$0xff]
        %v1774 = vld [vmem:[%s1684 + $0x2c8] sm:$0xff]
        %v1775 = vld [vmem:[%s1684 + $0x2d0] sm:$0xff]
        %v1776 = vld [vmem:[%s1684 + $0x2d8] sm:$0xff]
        %v1777 = vld [vmem:[%s1684 + $0x2e0] sm:$0xff]
        %v1778 = vld [vmem:[%s1684 + $0x2e8] sm:$0xff]
        %v1779 = vld [vmem:[%s1684 + $0x2f0] sm:$0xff]
        %v1780 = vld [vmem:[%s1684 + $0x2f8] sm:$0xff]
        %v1781 = vld [vmem:[%s1684 + $0x300] sm:$0xff]
        %v1782 = vld [vmem:[%s1684 + $0x308] sm:$0xff]
        %v1783 = vld [vmem:[%s1684 + $0x310] sm:$0xff]
        %v1784 = vld [vmem:[%s1684 + $0x318] sm:$0xff]
        %v1785 = vld [vmem:[%s1684 + $0x320] sm:$0xff]
        %v1786 = vld [vmem:[%s1684 + $0x328] sm:$0xff]
        %v1787 = vld [vmem:[%s1684 + $0x330] sm:$0xff]
        %v1788 = vld [vmem:[%s1684 + $0x338] sm:$0xff]
        %v1789 = vld [vmem:[%s1684 + $0x340] sm:$0xff]
        %v1790 = vld [vmem:[%s1684 + $0x348] sm:$0xff]
        %v1791 = vld [vmem:[%s1684 + $0x350] sm:$0xff]
        %v1792 = vld [vmem:[%s1684 + $0x358] sm:$0xff]
        %v1793 = vld [vmem:[%s1684 + $0x360] sm:$0xff]
        %v1794 = vld [vmem:[%s1684 + $0x368] sm:$0xff]
        %v1795 = vld [vmem:[%s1684 + $0x370] sm:$0xff]
        %v1796 = vld [vmem:[%s1684 + $0x378] sm:$0xff]
        %v1797 = vld [vmem:[%s1684 + $0x380] sm:$0xff]
        %v1798 = vld [vmem:[%s1684 + $0x388] sm:$0xff]
        %v1799 = vld [vmem:[%s1684 + $0x390] sm:$0xff]
        %v1800 = vld [vmem:[%s1684 + $0x398] sm:$0xff]
        %v1801 = vld [vmem:[%s1684 + $0x3a0] sm:$0xff]
        %v1802 = vld [vmem:[%s1684 + $0x3a8] sm:$0xff]
        %v1803 = vld [vmem:[%s1684 + $0x3b0] sm:$0xff]
        %v1804 = vld [vmem:[%s1684 + $0x3b8] sm:$0xff]
        %v1805 = vld [vmem:[%s1684 + $0x3c0] sm:$0xff]
        %v1806 = vld [vmem:[%s1684 + $0x3c8] sm:$0xff]
        %v1807 = vld [vmem:[%s1684 + $0x3d0] sm:$0xff]
        %v1808 = vld [vmem:[%s1684 + $0x3d8] sm:$0xff]
        %v1809 = vld [vmem:[%s1684 + $0x3e0] sm:$0xff]
        %v1810 = vld [vmem:[%s1684 + $0x3e8] sm:$0xff]
        %v1811 = vld [vmem:[%s1684 + $0x3f0] sm:$0xff]
        %v1812 = vld [vmem:[%s1684 + $0x3f8] sm:$0xff]
        %v1813 = vld [vmem:[%s1684 + $0x400] sm:$0xff]
        %v1814 = vld [vmem:[%s1684 + $0x408] sm:$0xff]
        %v1815 = vld [vmem:[%s1684 + $0x410] sm:$0xff]
        %v1816 = vld [vmem:[%s1684 + $0x418] sm:$0xff]
        %v1817 = vld [vmem:[%s1684 + $0x420] sm:$0xff]
        %v1818 = vld [vmem:[%s1684 + $0x428] sm:$0xff]
        %v1819 = vld [vmem:[%s1684 + $0x430] sm:$0xff]
        %v1820 = vld [vmem:[%s1684 + $0x438] sm:$0xff]
        %v1821 = vld [vmem:[%s1684 + $0x440] sm:$0xff]
        %v1822 = vld [vmem:[%s1684 + $0x448] sm:$0xff]
        %v1823 = vld [vmem:[%s1684 + $0x450] sm:$0xff]
        %v1824 = vld [vmem:[%s1684 + $0x458] sm:$0xff]
        %v1825 = vld [vmem:[%s1684 + $0x460] sm:$0xff]
        %v1826 = vld [vmem:[%s1684 + $0x468] sm:$0xff]
        %v1827 = vld [vmem:[%s1684 + $0x470] sm:$0xff]
        %v1828 = vld [vmem:[%s1684 + $0x478] sm:$0xff]
        %v1829 = vld [vmem:[%s1684 + $0x480] sm:$0xff]
        %v1830 = vld [vmem:[%s1684 + $0x488] sm:$0xff]
        %v1831 = vld [vmem:[%s1684 + $0x490] sm:$0xff]
        %v1832 = vld [vmem:[%s1684 + $0x498] sm:$0xff]
        %v1833 = vld [vmem:[%s1684 + $0x4a0] sm:$0xff]
        %v1834 = vld [vmem:[%s1684 + $0x4a8] sm:$0xff]
        %v1835 = vld [vmem:[%s1684 + $0x4b0] sm:$0xff]
        %v1836 = vld [vmem:[%s1684 + $0x4b8] sm:$0xff]
        %v1837 = vld [vmem:[%s1684 + $0x4c0] sm:$0xff]
        %v1838 = vld [vmem:[%s1684 + $0x4c8] sm:$0xff]
        %v1839 = vld [vmem:[%s1684 + $0x4d0] sm:$0xff]
        %v1840 = vld [vmem:[%s1684 + $0x4d8] sm:$0xff]
        %v1841 = vld [vmem:[%s1684 + $0x4e0] sm:$0xff]
        %v1842 = vld [vmem:[%s1684 + $0x4e8] sm:$0xff]
        %v1843 = vld [vmem:[%s1684 + $0x4f0] sm:$0xff]
        %v1844 = vld [vmem:[%s1684 + $0x4f8] sm:$0xff]
        %v1845 = vld [vmem:[%s1684 + $0x500] sm:$0xff]
        %v1846 = vld [vmem:[%s1684 + $0x508] sm:$0xff]
        %v1847 = vld [vmem:[%s1684 + $0x510] sm:$0xff]
        %v1848 = vld [vmem:[%s1684 + $0x518] sm:$0xff]
        %v1849 = vld [vmem:[%s1684 + $0x520] sm:$0xff]
        %v1850 = vld [vmem:[%s1684 + $0x528] sm:$0xff]
        %v1851 = vld [vmem:[%s1684 + $0x530] sm:$0xff]
        %v1852 = vld [vmem:[%s1684 + $0x538] sm:$0xff]
        %v1853 = vld [vmem:[%s1684 + $0x540] sm:$0xff]
        %v1854 = vld [vmem:[%s1684 + $0x548] sm:$0xff]
        %v1855 = vld [vmem:[%s1684 + $0x550] sm:$0xff]
        %v1856 = vld [vmem:[%s1684 + $0x558] sm:$0xff]
        %v1857 = vld [vmem:[%s1684 + $0x560] sm:$0xff]
        %v1858 = vld [vmem:[%s1684 + $0x568] sm:$0xff]
        %v1859 = vld [vmem:[%s1684 + $0x570] sm:$0xff]
        %v1860 = vld [vmem:[%s1684 + $0x578] sm:$0xff]
        %v1861 = vld [vmem:[%s1684 + $0x580] sm:$0xff]
        %v1862 = vld [vmem:[%s1684 + $0x588] sm:$0xff]
        %v1863 = vld [vmem:[%s1684 + $0x590] sm:$0xff]
        %v1864 = vld [vmem:[%s1684 + $0x598] sm:$0xff]
        %v1865 = vld [vmem:[%s1684 + $0x5a0] sm:$0xff]
        %v1866 = vld [vmem:[%s1684 + $0x5a8] sm:$0xff]
        %v1867 = vld [vmem:[%s1684 + $0x5b0] sm:$0xff]
        %v1868 = vld [vmem:[%s1684 + $0x5b8] sm:$0xff]
        %v1869 = vld [vmem:[%s1684 + $0x5c0] sm:$0xff]
        %v1870 = vld [vmem:[%s1684 + $0x5c8] sm:$0xff]
        %v1871 = vld [vmem:[%s1684 + $0x5d0] sm:$0xff]
        %v1872 = vld [vmem:[%s1684 + $0x5d8] sm:$0xff]
        %v1873 = vld [vmem:[%s1684 + $0x5e0] sm:$0xff]
        %v1874 = vld [vmem:[%s1684 + $0x5e8] sm:$0xff]
        %v1875 = vld [vmem:[%s1684 + $0x5f0] sm:$0xff]
        %v1876 = vld [vmem:[%s1684 + $0x5f8] sm:$0xff]
        %s1877 = scalar_lea.vmem [#allocation7], 4
        %v1878 = vld [vmem:[%s1877] sm:$0x3]
        %1879 = vmatpush.msra.mxu0 %v1775
        %1880 = vmatpush.msra.mxu0 %v1769
        %1881 = vmatpush.msra.mxu0 %v1763
        %1882 = vmatpush.msra.mxu0 %v1757
        %1883 = vmatpush.msra.mxu0 %v1751
        %1884 = vmatpush.msra.mxu0 %v1745
        %1885 = vmatpush.msra.mxu0 %v1739
        %1886 = vmatpush.msra.mxu0 %v1733
        %1887 = vmatpush.msra.mxu0 %v1727
        %1888 = vmatpush.msra.mxu0 %v1721
        %1889 = vmatpush.msra.mxu0 %v1715
        %1890 = vmatpush.msra.mxu0 %v1709
        %1891 = vmatpush.msra.mxu0 %v1703
        %1892 = vmatpush.msra.mxu0 %v1697
        %1893 = vmatpush.msra.mxu0 %v1691
        %1894 = vmatpush.msra.mxu0 %v1685
        %1895 = vmatmul.f32.gmra.mxu0 %v1680
        %v1896 = vpop.f32.mrf.mxu0
        %v1897 = vadd.f32 0.0, %v1896
        %1898 = vmatmul.f32.gmra.mxu0 %v1682
        %v1899 = vpop.f32.mrf.mxu0
        %v1900 = vadd.f32 0.0, %v1899
        %1901 = vdwg.mxu0
        %1902 = vmatpush.msra.mxu0 %v1871
        %1903 = vmatpush.msra.mxu0 %v1865
        %1904 = vmatpush.msra.mxu0 %v1859
        %1905 = vmatpush.msra.mxu0 %v1853
        %1906 = vmatpush.msra.mxu0 %v1847
        %1907 = vmatpush.msra.mxu0 %v1841
        %1908 = vmatpush.msra.mxu0 %v1835
        %1909 = vmatpush.msra.mxu0 %v1829
        %1910 = vmatpush.msra.mxu0 %v1823
        %1911 = vmatpush.msra.mxu0 %v1817
        %1912 = vmatpush.msra.mxu0 %v1811
        %1913 = vmatpush.msra.mxu0 %v1805
        %1914 = vmatpush.msra.mxu0 %v1799
        %1915 = vmatpush.msra.mxu0 %v1793
        %1916 = vmatpush.msra.mxu0 %v1787
        %1917 = vmatpush.msra.mxu0 %v1781
        %1918 = vmatmul.f32.gmra.mxu0 %v1681
        %v1919 = vpop.f32.mrf.mxu0
        %v1920 = vadd.f32 %v1897, %v1919
        %1921 = vmatmul.f32.gmra.mxu0 %v1683
        %v1922 = vpop.f32.mrf.mxu0
        %v1923 = vadd.f32 %v1900, %v1922
        %1924 = vdwg.mxu0
        %1925 = vmatpush.msra.mxu0 %v1776
        %1926 = vmatpush.msra.mxu0 %v1770
        %1927 = vmatpush.msra.mxu0 %v1764
        %1928 = vmatpush.msra.mxu0 %v1758
        %1929 = vmatpush.msra.mxu0 %v1752
        %1930 = vmatpush.msra.mxu0 %v1746
        %1931 = vmatpush.msra.mxu0 %v1740
        %1932 = vmatpush.msra.mxu0 %v1734
        %1933 = vmatpush.msra.mxu0 %v1728
        %1934 = vmatpush.msra.mxu0 %v1722
        %1935 = vmatpush.msra.mxu0 %v1716
        %1936 = vmatpush.msra.mxu0 %v1710
        %1937 = vmatpush.msra.mxu0 %v1704
        %1938 = vmatpush.msra.mxu0 %v1698
        %1939 = vmatpush.msra.mxu0 %v1692
        %1940 = vmatpush.msra.mxu0 %v1686
        %1941 = vmatmul.f32.gmra.mxu0 %v1680
        %v1942 = vpop.f32.mrf.mxu0
        %v1943 = vadd.f32 0.0, %v1942
        %1944 = vmatmul.f32.gmra.mxu0 %v1682
        %v1945 = vpop.f32.mrf.mxu0
        %v1946 = vadd.f32 0.0, %v1945
        %1947 = vdwg.mxu0
        %1948 = vmatpush.msra.mxu0 %v1872
        %1949 = vmatpush.msra.mxu0 %v1866
        %1950 = vmatpush.msra.mxu0 %v1860
        %1951 = vmatpush.msra.mxu0 %v1854
        %1952 = vmatpush.msra.mxu0 %v1848
        %1953 = vmatpush.msra.mxu0 %v1842
        %1954 = vmatpush.msra.mxu0 %v1836
        %1955 = vmatpush.msra.mxu0 %v1830
        %1956 = vmatpush.msra.mxu0 %v1824
        %1957 = vmatpush.msra.mxu0 %v1818
        %1958 = vmatpush.msra.mxu0 %v1812
        %1959 = vmatpush.msra.mxu0 %v1806
        %1960 = vmatpush.msra.mxu0 %v1800
        %1961 = vmatpush.msra.mxu0 %v1794
        %1962 = vmatpush.msra.mxu0 %v1788
        %1963 = vmatpush.msra.mxu0 %v1782
        %1964 = vmatmul.f32.gmra.mxu0 %v1681
        %v1965 = vpop.f32.mrf.mxu0
        %v1966 = vadd.f32 %v1943, %v1965
        %1967 = vmatmul.f32.gmra.mxu0 %v1683
        %v1968 = vpop.f32.mrf.mxu0
        %v1969 = vadd.f32 %v1946, %v1968
        %1970 = vdwg.mxu0
        %1971 = vmatpush.msra.mxu0 %v1777
        %1972 = vmatpush.msra.mxu0 %v1771
        %1973 = vmatpush.msra.mxu0 %v1765
        %1974 = vmatpush.msra.mxu0 %v1759
        %1975 = vmatpush.msra.mxu0 %v1753
        %1976 = vmatpush.msra.mxu0 %v1747
        %1977 = vmatpush.msra.mxu0 %v1741
        %1978 = vmatpush.msra.mxu0 %v1735
        %1979 = vmatpush.msra.mxu0 %v1729
        %1980 = vmatpush.msra.mxu0 %v1723
        %1981 = vmatpush.msra.mxu0 %v1717
        %1982 = vmatpush.msra.mxu0 %v1711
        %1983 = vmatpush.msra.mxu0 %v1705
        %1984 = vmatpush.msra.mxu0 %v1699
        %1985 = vmatpush.msra.mxu0 %v1693
        %1986 = vmatpush.msra.mxu0 %v1687
        %1987 = vmatmul.f32.gmra.mxu0 %v1680
        %v1988 = vpop.f32.mrf.mxu0
        %v1989 = vadd.f32 0.0, %v1988
        %1990 = vmatmul.f32.gmra.mxu0 %v1682
        %v1991 = vpop.f32.mrf.mxu0
        %v1992 = vadd.f32 0.0, %v1991
        %1993 = vdwg.mxu0
        %1994 = vmatpush.msra.mxu0 %v1873
        %1995 = vmatpush.msra.mxu0 %v1867
        %1996 = vmatpush.msra.mxu0 %v1861
        %1997 = vmatpush.msra.mxu0 %v1855
        %1998 = vmatpush.msra.mxu0 %v1849
        %1999 = vmatpush.msra.mxu0 %v1843
        %2000 = vmatpush.msra.mxu0 %v1837
        %2001 = vmatpush.msra.mxu0 %v1831
        %2002 = vmatpush.msra.mxu0 %v1825
        %2003 = vmatpush.msra.mxu0 %v1819
        %2004 = vmatpush.msra.mxu0 %v1813
        %2005 = vmatpush.msra.mxu0 %v1807
        %2006 = vmatpush.msra.mxu0 %v1801
        %2007 = vmatpush.msra.mxu0 %v1795
        %2008 = vmatpush.msra.mxu0 %v1789
        %2009 = vmatpush.msra.mxu0 %v1783
        %2010 = vmatmul.f32.gmra.mxu0 %v1681
        %v2011 = vpop.f32.mrf.mxu0
        %v2012 = vadd.f32 %v1989, %v2011
        %2013 = vmatmul.f32.gmra.mxu0 %v1683
        %v2014 = vpop.f32.mrf.mxu0
        %v2015 = vadd.f32 %v1992, %v2014
        %2016 = vdwg.mxu0
        %2017 = vmatpush.msra.mxu0 %v1778
        %2018 = vmatpush.msra.mxu0 %v1772
        %2019 = vmatpush.msra.mxu0 %v1766
        %2020 = vmatpush.msra.mxu0 %v1760
        %2021 = vmatpush.msra.mxu0 %v1754
        %2022 = vmatpush.msra.mxu0 %v1748
        %2023 = vmatpush.msra.mxu0 %v1742
        %2024 = vmatpush.msra.mxu0 %v1736
        %2025 = vmatpush.msra.mxu0 %v1730
        %2026 = vmatpush.msra.mxu0 %v1724
        %2027 = vmatpush.msra.mxu0 %v1718
        %2028 = vmatpush.msra.mxu0 %v1712
        %2029 = vmatpush.msra.mxu0 %v1706
        %2030 = vmatpush.msra.mxu0 %v1700
        %2031 = vmatpush.msra.mxu0 %v1694
        %2032 = vmatpush.msra.mxu0 %v1688
        %2033 = vmatmul.f32.gmra.mxu0 %v1680
        %v2034 = vpop.f32.mrf.mxu0
        %v2035 = vadd.f32 0.0, %v2034
        %2036 = vmatmul.f32.gmra.mxu0 %v1682
        %v2037 = vpop.f32.mrf.mxu0
        %v2038 = vadd.f32 0.0, %v2037
        %2039 = vdwg.mxu0
        %2040 = vmatpush.msra.mxu0 %v1874
        %2041 = vmatpush.msra.mxu0 %v1868
        %2042 = vmatpush.msra.mxu0 %v1862
        %2043 = vmatpush.msra.mxu0 %v1856
        %2044 = vmatpush.msra.mxu0 %v1850
        %2045 = vmatpush.msra.mxu0 %v1844
        %2046 = vmatpush.msra.mxu0 %v1838
        %2047 = vmatpush.msra.mxu0 %v1832
        %2048 = vmatpush.msra.mxu0 %v1826
        %2049 = vmatpush.msra.mxu0 %v1820
        %2050 = vmatpush.msra.mxu0 %v1814
        %2051 = vmatpush.msra.mxu0 %v1808
        %2052 = vmatpush.msra.mxu0 %v1802
        %2053 = vmatpush.msra.mxu0 %v1796
        %2054 = vmatpush.msra.mxu0 %v1790
        %2055 = vmatpush.msra.mxu0 %v1784
        %2056 = vmatmul.f32.gmra.mxu0 %v1681
        %v2057 = vpop.f32.mrf.mxu0
        %v2058 = vadd.f32 %v2035, %v2057
        %2059 = vmatmul.f32.gmra.mxu0 %v1683
        %v2060 = vpop.f32.mrf.mxu0
        %v2061 = vadd.f32 %v2038, %v2060
        %2062 = vdwg.mxu0
        %2063 = vmatpush.msra.mxu0 %v1779
        %2064 = vmatpush.msra.mxu0 %v1773
        %2065 = vmatpush.msra.mxu0 %v1767
        %2066 = vmatpush.msra.mxu0 %v1761
        %2067 = vmatpush.msra.mxu0 %v1755
        %2068 = vmatpush.msra.mxu0 %v1749
        %2069 = vmatpush.msra.mxu0 %v1743
        %2070 = vmatpush.msra.mxu0 %v1737
        %2071 = vmatpush.msra.mxu0 %v1731
        %2072 = vmatpush.msra.mxu0 %v1725
        %2073 = vmatpush.msra.mxu0 %v1719
        %2074 = vmatpush.msra.mxu0 %v1713
        %2075 = vmatpush.msra.mxu0 %v1707
        %2076 = vmatpush.msra.mxu0 %v1701
        %2077 = vmatpush.msra.mxu0 %v1695
        %2078 = vmatpush.msra.mxu0 %v1689
        %2079 = vmatmul.f32.gmra.mxu0 %v1680
        %v2080 = vpop.f32.mrf.mxu0
        %v2081 = vadd.f32 0.0, %v2080
        %2082 = vmatmul.f32.gmra.mxu0 %v1682
        %v2083 = vpop.f32.mrf.mxu0
        %v2084 = vadd.f32 0.0, %v2083
        %2085 = vdwg.mxu0
        %2086 = vmatpush.msra.mxu0 %v1875
        %2087 = vmatpush.msra.mxu0 %v1869
        %2088 = vmatpush.msra.mxu0 %v1863
        %2089 = vmatpush.msra.mxu0 %v1857
        %2090 = vmatpush.msra.mxu0 %v1851
        %2091 = vmatpush.msra.mxu0 %v1845
        %2092 = vmatpush.msra.mxu0 %v1839
        %2093 = vmatpush.msra.mxu0 %v1833
        %2094 = vmatpush.msra.mxu0 %v1827
        %2095 = vmatpush.msra.mxu0 %v1821
        %2096 = vmatpush.msra.mxu0 %v1815
        %2097 = vmatpush.msra.mxu0 %v1809
        %2098 = vmatpush.msra.mxu0 %v1803
        %2099 = vmatpush.msra.mxu0 %v1797
        %2100 = vmatpush.msra.mxu0 %v1791
        %2101 = vmatpush.msra.mxu0 %v1785
        %2102 = vmatmul.f32.gmra.mxu0 %v1681
        %v2103 = vpop.f32.mrf.mxu0
        %v2104 = vadd.f32 %v2081, %v2103
        %2105 = vmatmul.f32.gmra.mxu0 %v1683
        %v2106 = vpop.f32.mrf.mxu0
        %v2107 = vadd.f32 %v2084, %v2106
        %2108 = vdwg.mxu0
        %2109 = vmatpush.msra.mxu0 %v1780
        %2110 = vmatpush.msra.mxu0 %v1774
        %2111 = vmatpush.msra.mxu0 %v1768
        %2112 = vmatpush.msra.mxu0 %v1762
        %2113 = vmatpush.msra.mxu0 %v1756
        %2114 = vmatpush.msra.mxu0 %v1750
        %2115 = vmatpush.msra.mxu0 %v1744
        %2116 = vmatpush.msra.mxu0 %v1738
        %2117 = vmatpush.msra.mxu0 %v1732
        %2118 = vmatpush.msra.mxu0 %v1726
        %2119 = vmatpush.msra.mxu0 %v1720
        %2120 = vmatpush.msra.mxu0 %v1714
        %2121 = vmatpush.msra.mxu0 %v1708
        %2122 = vmatpush.msra.mxu0 %v1702
        %2123 = vmatpush.msra.mxu0 %v1696
        %2124 = vmatpush.msra.mxu0 %v1690
        %2125 = vmatmul.f32.gmra.mxu0 %v1680
        %v2126 = vpop.f32.mrf.mxu0
        %v2127 = vadd.f32 0.0, %v2126
        %2128 = vmatmul.f32.gmra.mxu0 %v1682
        %v2129 = vpop.f32.mrf.mxu0
        %v2130 = vadd.f32 0.0, %v2129
        %2131 = vdwg.mxu0
        %2132 = vmatpush.msra.mxu0 %v1876
        %2133 = vmatpush.msra.mxu0 %v1870
        %2134 = vmatpush.msra.mxu0 %v1864
        %2135 = vmatpush.msra.mxu0 %v1858
        %2136 = vmatpush.msra.mxu0 %v1852
        %2137 = vmatpush.msra.mxu0 %v1846
        %2138 = vmatpush.msra.mxu0 %v1840
        %2139 = vmatpush.msra.mxu0 %v1834
        %2140 = vmatpush.msra.mxu0 %v1828
        %2141 = vmatpush.msra.mxu0 %v1822
        %2142 = vmatpush.msra.mxu0 %v1816
        %2143 = vmatpush.msra.mxu0 %v1810
        %2144 = vmatpush.msra.mxu0 %v1804
        %2145 = vmatpush.msra.mxu0 %v1798
        %2146 = vmatpush.msra.mxu0 %v1792
        %2147 = vmatpush.msra.mxu0 %v1786
        %2148 = vmatmul.f32.gmra.mxu0 %v1681
        %v2149 = vpop.f32.mrf.mxu0
        %v2150 = vadd.f32 %v2127, %v2149
        %2151 = vmatmul.f32.gmra.mxu0 %v1683
        %v2152 = vpop.f32.mrf.mxu0
        %v2153 = vadd.f32 %v2130, %v2152
        %2154 = vdwg.mxu0
        %v2155 = vrot.slane %v1920, 7
        %v2156 = vrot.slane %v1966, 7
        %v2157 = vrot.slane %v1923, 7
        %v2158 = vrot.slane %v1969, 7
        %v2159 = vsel %vm621, %v2155, %v2157
        %v2160 = vsel %vm621, %v2156, %v2158
        %v2161 = vsel %vm621, %v2157, %v2155
        %v2162 = vsel %vm621, %v2158, %v2156
        %v2163 = vsel %vm615, 0.0, %v2161
        %v2164 = vsel %vm615, 0.0, %v2162
        %v2165 = vsel %vm616, 0.0, %v2159
        %v2166 = vsel %vm616, 0.0, %v2160
        %v2167 = vrot.slane %v2104, 1
        %v2168 = vrot.slane %v2150, 1
        %v2169 = vrot.slane %v2107, 1
        %v2170 = vrot.slane %v2153, 1
        %v2171 = vsel %vm636, %v2167, %v2169
        %v2172 = vsel %vm636, %v2168, %v2170
        %v2173 = vsel %vm636, %v2169, %v2167
        %v2174 = vsel %vm636, %v2170, %v2168
        %v2175 = vsel %vm630, 0.0, %v2171
        %v2176 = vsel %vm630, 0.0, %v2172
        %v2177 = vsel %vm631, 0.0, %v2173
        %v2178 = vsel %vm631, 0.0, %v2174
        %v2179 = vadd.f32 %v2163, %v2012
        %v2180 = vadd.f32 %v2164, %v2058
        %v2181 = vadd.f32 %v2165, %v2015
        %v2182 = vadd.f32 %v2166, %v2061
        %v2183 = vadd.f32 %v2179, %v2175
        %v2184 = vadd.f32 %v2180, %v2176
        %v2185 = vadd.f32 %v2181, %v2177
        %v2186 = vadd.f32 %v2182, %v2178
        %v2188 = vperm.slane %v1878, 0
        %v2189 = vperm.slane %v1878, 1
        %v2192 = vadd.f32 %v2183, %v2188
        %v2193 = vadd.f32 %v2184, %v2189
        %v2194 = vadd.f32 %v2185, %v2188
        %v2195 = vadd.f32 %v2186, %v2189
        %v2196 = vld [vmem:[#allocation9] sm:$0xff]
        %v2197 = vld [vmem:[#allocation9 + $0x8] sm:$0xff]
        %v2198 = vld [vmem:[#allocation9 + $0x10] sm:$0xff]
        %v2199 = vld [vmem:[#allocation9 + $0x18] sm:$0xff]
        %v2200 = vld [vmem:[#allocation9 + $0x20] sm:$0xff]
        %v2201 = vld [vmem:[#allocation9 + $0x28] sm:$0xff]
        %v2202 = vld [vmem:[#allocation9 + $0x30] sm:$0xff]
        %v2203 = vld [vmem:[#allocation9 + $0x38] sm:$0xff]
        %v2204 = vld [vmem:[#allocation9 + $0x40] sm:$0xff]
        %v2205 = vld [vmem:[#allocation9 + $0x48] sm:$0xff]
        %v2206 = vld [vmem:[#allocation9 + $0x50] sm:$0xff]
        %v2207 = vld [vmem:[#allocation9 + $0x58] sm:$0xff]
        %v2208 = vld [vmem:[#allocation9 + $0x60] sm:$0xff]
        %v2209 = vld [vmem:[#allocation9 + $0x68] sm:$0xff]
        %v2210 = vld [vmem:[#allocation9 + $0x70] sm:$0xff]
        %v2211 = vld [vmem:[#allocation9 + $0x78] sm:$0xff]
        %v2212 = vld [vmem:[#allocation9 + $0x80] sm:$0xff]
        %v2213 = vld [vmem:[#allocation9 + $0x88] sm:$0xff]
        %v2214 = vld [vmem:[#allocation9 + $0x90] sm:$0xff]
        %v2215 = vld [vmem:[#allocation9 + $0x98] sm:$0xff]
        %v2216 = vld [vmem:[#allocation9 + $0xa0] sm:$0xff]
        %v2217 = vld [vmem:[#allocation9 + $0xa8] sm:$0xff]
        %v2218 = vld [vmem:[#allocation9 + $0xb0] sm:$0xff]
        %v2219 = vld [vmem:[#allocation9 + $0xb8] sm:$0xff]
        %v2220 = vld [vmem:[#allocation9 + $0xc0] sm:$0xff]
        %v2221 = vld [vmem:[#allocation9 + $0xc8] sm:$0xff]
        %v2222 = vld [vmem:[#allocation9 + $0xd0] sm:$0xff]
        %v2223 = vld [vmem:[#allocation9 + $0xd8] sm:$0xff]
        %v2224 = vld [vmem:[#allocation9 + $0xe0] sm:$0xff]
        %v2225 = vld [vmem:[#allocation9 + $0xe8] sm:$0xff]
        %v2226 = vld [vmem:[#allocation9 + $0xf0] sm:$0xff]
        %v2227 = vld [vmem:[#allocation9 + $0xf8] sm:$0xff]
        %v2228 = vld [vmem:[#allocation9 + $0x100] sm:$0xff]
        %v2229 = vld [vmem:[#allocation9 + $0x108] sm:$0xff]
        %v2230 = vld [vmem:[#allocation9 + $0x110] sm:$0xff]
        %v2231 = vld [vmem:[#allocation9 + $0x118] sm:$0xff]
        %v2232 = vld [vmem:[#allocation9 + $0x120] sm:$0xff]
        %v2233 = vld [vmem:[#allocation9 + $0x128] sm:$0xff]
        %v2234 = vld [vmem:[#allocation9 + $0x130] sm:$0xff]
        %v2235 = vld [vmem:[#allocation9 + $0x138] sm:$0xff]
        %v2236 = vld [vmem:[#allocation9 + $0x140] sm:$0xff]
        %v2237 = vld [vmem:[#allocation9 + $0x148] sm:$0xff]
        %v2238 = vld [vmem:[#allocation9 + $0x150] sm:$0xff]
        %v2239 = vld [vmem:[#allocation9 + $0x158] sm:$0xff]
        %v2240 = vld [vmem:[#allocation9 + $0x160] sm:$0xff]
        %v2241 = vld [vmem:[#allocation9 + $0x168] sm:$0xff]
        %v2242 = vld [vmem:[#allocation9 + $0x170] sm:$0xff]
        %v2243 = vld [vmem:[#allocation9 + $0x178] sm:$0xff]
        %v2244 = vld [vmem:[#allocation9 + $0x180] sm:$0xff]
        %v2245 = vld [vmem:[#allocation9 + $0x188] sm:$0xff]
        %v2246 = vld [vmem:[#allocation9 + $0x190] sm:$0xff]
        %v2247 = vld [vmem:[#allocation9 + $0x198] sm:$0xff]
        %v2248 = vld [vmem:[#allocation9 + $0x1a0] sm:$0xff]
        %v2249 = vld [vmem:[#allocation9 + $0x1a8] sm:$0xff]
        %v2250 = vld [vmem:[#allocation9 + $0x1b0] sm:$0xff]
        %v2251 = vld [vmem:[#allocation9 + $0x1b8] sm:$0xff]
        %v2252 = vld [vmem:[#allocation9 + $0x1c0] sm:$0xff]
        %v2253 = vld [vmem:[#allocation9 + $0x1c8] sm:$0xff]
        %v2254 = vld [vmem:[#allocation9 + $0x1d0] sm:$0xff]
        %v2255 = vld [vmem:[#allocation9 + $0x1d8] sm:$0xff]
        %v2256 = vld [vmem:[#allocation9 + $0x1e0] sm:$0xff]
        %v2257 = vld [vmem:[#allocation9 + $0x1e8] sm:$0xff]
        %v2258 = vld [vmem:[#allocation9 + $0x1f0] sm:$0xff]
        %v2259 = vld [vmem:[#allocation9 + $0x1f8] sm:$0xff]
        %v2260 = vld [vmem:[#allocation9 + $0x200] sm:$0xff]
        %v2261 = vld [vmem:[#allocation9 + $0x208] sm:$0xff]
        %v2262 = vld [vmem:[#allocation9 + $0x210] sm:$0xff]
        %v2263 = vld [vmem:[#allocation9 + $0x218] sm:$0xff]
        %v2264 = vld [vmem:[#allocation9 + $0x220] sm:$0xff]
        %v2265 = vld [vmem:[#allocation9 + $0x228] sm:$0xff]
        %v2266 = vld [vmem:[#allocation9 + $0x230] sm:$0xff]
        %v2267 = vld [vmem:[#allocation9 + $0x238] sm:$0xff]
        %v2268 = vld [vmem:[#allocation9 + $0x240] sm:$0xff]
        %v2269 = vld [vmem:[#allocation9 + $0x248] sm:$0xff]
        %v2270 = vld [vmem:[#allocation9 + $0x250] sm:$0xff]
        %v2271 = vld [vmem:[#allocation9 + $0x258] sm:$0xff]
        %v2272 = vld [vmem:[#allocation9 + $0x260] sm:$0xff]
        %v2273 = vld [vmem:[#allocation9 + $0x268] sm:$0xff]
        %v2274 = vld [vmem:[#allocation9 + $0x270] sm:$0xff]
        %v2275 = vld [vmem:[#allocation9 + $0x278] sm:$0xff]
        %v2276 = vld [vmem:[#allocation9 + $0x280] sm:$0xff]
        %v2277 = vld [vmem:[#allocation9 + $0x288] sm:$0xff]
        %v2278 = vld [vmem:[#allocation9 + $0x290] sm:$0xff]
        %v2279 = vld [vmem:[#allocation9 + $0x298] sm:$0xff]
        %v2280 = vld [vmem:[#allocation9 + $0x2a0] sm:$0xff]
        %v2281 = vld [vmem:[#allocation9 + $0x2a8] sm:$0xff]
        %v2282 = vld [vmem:[#allocation9 + $0x2b0] sm:$0xff]
        %v2283 = vld [vmem:[#allocation9 + $0x2b8] sm:$0xff]
        %v2284 = vld [vmem:[#allocation9 + $0x2c0] sm:$0xff]
        %v2285 = vld [vmem:[#allocation9 + $0x2c8] sm:$0xff]
        %v2286 = vld [vmem:[#allocation9 + $0x2d0] sm:$0xff]
        %v2287 = vld [vmem:[#allocation9 + $0x2d8] sm:$0xff]
        %v2288 = vld [vmem:[#allocation9 + $0x2e0] sm:$0xff]
        %v2289 = vld [vmem:[#allocation9 + $0x2e8] sm:$0xff]
        %v2290 = vld [vmem:[#allocation9 + $0x2f0] sm:$0xff]
        %v2291 = vld [vmem:[#allocation9 + $0x2f8] sm:$0xff]
        %v2292 = vld [vmem:[#allocation10] sm:$0x1]
        %2293 = vmatpush.msra.mxu0 %v2241
        %2294 = vmatpush.msra.mxu0 %v2238
        %2295 = vmatpush.msra.mxu0 %v2235
        %2296 = vmatpush.msra.mxu0 %v2232
        %2297 = vmatpush.msra.mxu0 %v2229
        %2298 = vmatpush.msra.mxu0 %v2226
        %2299 = vmatpush.msra.mxu0 %v2223
        %2300 = vmatpush.msra.mxu0 %v2220
        %2301 = vmatpush.msra.mxu0 %v2217
        %2302 = vmatpush.msra.mxu0 %v2214
        %2303 = vmatpush.msra.mxu0 %v2211
        %2304 = vmatpush.msra.mxu0 %v2208
        %2305 = vmatpush.msra.mxu0 %v2205
        %2306 = vmatpush.msra.mxu0 %v2202
        %2307 = vmatpush.msra.mxu0 %v2199
        %2308 = vmatpush.msra.mxu0 %v2196
        %2309 = vmatmul.f32.gmra.mxu0 %v2192
        %v2310 = vpop.f32.mrf.mxu0
        %v2311 = vadd.f32 0.0, %v2310
        %2312 = vmatmul.f32.gmra.mxu0 %v2194
        %v2313 = vpop.f32.mrf.mxu0
        %v2314 = vadd.f32 0.0, %v2313
        %2315 = vdwg.mxu0
        %2316 = vmatpush.msra.mxu0 %v2289
        %2317 = vmatpush.msra.mxu0 %v2286
        %2318 = vmatpush.msra.mxu0 %v2283
        %2319 = vmatpush.msra.mxu0 %v2280
        %2320 = vmatpush.msra.mxu0 %v2277
        %2321 = vmatpush.msra.mxu0 %v2274
        %2322 = vmatpush.msra.mxu0 %v2271
        %2323 = vmatpush.msra.mxu0 %v2268
        %2324 = vmatpush.msra.mxu0 %v2265
        %2325 = vmatpush.msra.mxu0 %v2262
        %2326 = vmatpush.msra.mxu0 %v2259
        %2327 = vmatpush.msra.mxu0 %v2256
        %2328 = vmatpush.msra.mxu0 %v2253
        %2329 = vmatpush.msra.mxu0 %v2250
        %2330 = vmatpush.msra.mxu0 %v2247
        %2331 = vmatpush.msra.mxu0 %v2244
        %2332 = vmatmul.f32.gmra.mxu0 %v2193
        %v2333 = vpop.f32.mrf.mxu0
        %v2334 = vadd.f32 %v2311, %v2333
        %2335 = vmatmul.f32.gmra.mxu0 %v2195
        %v2336 = vpop.f32.mrf.mxu0
        %v2337 = vadd.f32 %v2314, %v2336
        %2338 = vdwg.mxu0
        %2339 = vmatpush.msra.mxu0 %v2242
        %2340 = vmatpush.msra.mxu0 %v2239
        %2341 = vmatpush.msra.mxu0 %v2236
        %2342 = vmatpush.msra.mxu0 %v2233
        %2343 = vmatpush.msra.mxu0 %v2230
        %2344 = vmatpush.msra.mxu0 %v2227
        %2345 = vmatpush.msra.mxu0 %v2224
        %2346 = vmatpush.msra.mxu0 %v2221
        %2347 = vmatpush.msra.mxu0 %v2218
        %2348 = vmatpush.msra.mxu0 %v2215
        %2349 = vmatpush.msra.mxu0 %v2212
        %2350 = vmatpush.msra.mxu0 %v2209
        %2351 = vmatpush.msra.mxu0 %v2206
        %2352 = vmatpush.msra.mxu0 %v2203
        %2353 = vmatpush.msra.mxu0 %v2200
        %2354 = vmatpush.msra.mxu0 %v2197
        %2355 = vmatmul.f32.gmra.mxu0 %v2192
        %v2356 = vpop.f32.mrf.mxu0
        %v2357 = vadd.f32 0.0, %v2356
        %2358 = vmatmul.f32.gmra.mxu0 %v2194
        %v2359 = vpop.f32.mrf.mxu0
        %v2360 = vadd.f32 0.0, %v2359
        %2361 = vdwg.mxu0
        %2362 = vmatpush.msra.mxu0 %v2290
        %2363 = vmatpush.msra.mxu0 %v2287
        %2364 = vmatpush.msra.mxu0 %v2284
        %2365 = vmatpush.msra.mxu0 %v2281
        %2366 = vmatpush.msra.mxu0 %v2278
        %2367 = vmatpush.msra.mxu0 %v2275
        %2368 = vmatpush.msra.mxu0 %v2272
        %2369 = vmatpush.msra.mxu0 %v2269
        %2370 = vmatpush.msra.mxu0 %v2266
        %2371 = vmatpush.msra.mxu0 %v2263
        %2372 = vmatpush.msra.mxu0 %v2260
        %2373 = vmatpush.msra.mxu0 %v2257
        %2374 = vmatpush.msra.mxu0 %v2254
        %2375 = vmatpush.msra.mxu0 %v2251
        %2376 = vmatpush.msra.mxu0 %v2248
        %2377 = vmatpush.msra.mxu0 %v2245
        %2378 = vmatmul.f32.gmra.mxu0 %v2193
        %v2379 = vpop.f32.mrf.mxu0
        %v2380 = vadd.f32 %v2357, %v2379
        %2381 = vmatmul.f32.gmra.mxu0 %v2195
        %v2382 = vpop.f32.mrf.mxu0
        %v2383 = vadd.f32 %v2360, %v2382
        %2384 = vdwg.mxu0
        %2385 = vmatpush.msra.mxu0 %v2243
        %2386 = vmatpush.msra.mxu0 %v2240
        %2387 = vmatpush.msra.mxu0 %v2237
        %2388 = vmatpush.msra.mxu0 %v2234
        %2389 = vmatpush.msra.mxu0 %v2231
        %2390 = vmatpush.msra.mxu0 %v2228
        %2391 = vmatpush.msra.mxu0 %v2225
        %2392 = vmatpush.msra.mxu0 %v2222
        %2393 = vmatpush.msra.mxu0 %v2219
        %2394 = vmatpush.msra.mxu0 %v2216
        %2395 = vmatpush.msra.mxu0 %v2213
        %2396 = vmatpush.msra.mxu0 %v2210
        %2397 = vmatpush.msra.mxu0 %v2207
        %2398 = vmatpush.msra.mxu0 %v2204
        %2399 = vmatpush.msra.mxu0 %v2201
        %2400 = vmatpush.msra.mxu0 %v2198
        %2401 = vmatmul.f32.gmra.mxu0 %v2192
        %v2402 = vpop.f32.mrf.mxu0
        %v2403 = vadd.f32 0.0, %v2402
        %2404 = vmatmul.f32.gmra.mxu0 %v2194
        %v2405 = vpop.f32.mrf.mxu0
        %v2406 = vadd.f32 0.0, %v2405
        %2407 = vdwg.mxu0
        %2408 = vmatpush.msra.mxu0 %v2291
        %2409 = vmatpush.msra.mxu0 %v2288
        %2410 = vmatpush.msra.mxu0 %v2285
        %2411 = vmatpush.msra.mxu0 %v2282
        %2412 = vmatpush.msra.mxu0 %v2279
        %2413 = vmatpush.msra.mxu0 %v2276
        %2414 = vmatpush.msra.mxu0 %v2273
        %2415 = vmatpush.msra.mxu0 %v2270
        %2416 = vmatpush.msra.mxu0 %v2267
        %2417 = vmatpush.msra.mxu0 %v2264
        %2418 = vmatpush.msra.mxu0 %v2261
        %2419 = vmatpush.msra.mxu0 %v2258
        %2420 = vmatpush.msra.mxu0 %v2255
        %2421 = vmatpush.msra.mxu0 %v2252
        %2422 = vmatpush.msra.mxu0 %v2249
        %2423 = vmatpush.msra.mxu0 %v2246
        %2424 = vmatmul.f32.gmra.mxu0 %v2193
        %v2425 = vpop.f32.mrf.mxu0
        %v2426 = vadd.f32 %v2403, %v2425
        %2427 = vmatmul.f32.gmra.mxu0 %v2195
        %v2428 = vpop.f32.mrf.mxu0
        %v2429 = vadd.f32 %v2406, %v2428
        %2430 = vdwg.mxu0
        %v2431 = vrot.slane %v2334, 7
        %v2432 = vrot.slane %v2337, 7
        %v2433 = vsel %vm621, %v2431, %v2432
        %v2434 = vsel %vm621, %v2432, %v2431
        %v2435 = vsel %vm615, 0.0, %v2434
        %v2436 = vsel %vm616, 0.0, %v2433
        %v2437 = vrot.slane %v2426, 1
        %v2438 = vrot.slane %v2429, 1
        %v2439 = vsel %vm636, %v2437, %v2438
        %v2440 = vsel %vm636, %v2438, %v2437
        %v2441 = vsel %vm630, 0.0, %v2439
        %v2442 = vsel %vm631, 0.0, %v2440
        %v2443 = vadd.f32 %v2435, %v2380
        %v2444 = vadd.f32 %v2436, %v2383
        %v2445 = vadd.f32 %v2443, %v2441
        %v2446 = vadd.f32 %v2444, %v2442
        %v2448 = vperm.slane %v2292, 0
        %v2450 = vadd.f32 %v2445, %v2448
        %v2451 = vadd.f32 %v2446, %v2448
        %2452 = vst [vmem:[%s374] sm:$0xff] %v2450
        %2453 = vst [vmem:[%s374 + $0x8] sm:$0xff] %v2451
        %p2454 = scmp.lt.s32.totalorder %s22, 1
        %s2455 = scalar_select %p2454, %s22, 1
        %s2456 = smul.addr %s2455, 2
        %s2457 = smul.addr %s2456, 8
        %s2458 = scalar_lea.vmem %s7, %s2457
        // Predicated region
        $region73: #{postnet_forward.1} parent=47 // pred_check
          %p2459 = pneg %p192
        $region74: #{postnet_forward.1} parent=47 // pred_check_branch
          %2461 = sbr.rel (%p2459) target = $region76
        $region75: #{postnet_forward.1} parent=47 // pred_region
          _
        $region76: #{postnet_forward.1} parent=47 // pred_fallthru
          _
      $region48: #{postnet_forward.1} parent=5 // pred_fallthru
        _
      %p2462 = scmp.le.s32.totalorder 2, %s17
      // Predicated region
      $region77: #{postnet_forward.1} parent=5 // pred_check
        %p2463 = pneg %p2462
      $region78: #{postnet_forward.1} parent=5 // pred_check_branch
        %2465 = sbr.rel (%p2463) target = $region80
      $region79: #{postnet_forward.1} parent=5 // pred_region
        %s2466 = ssub.s32 %s17, 2
        // Predicated region
        $region81: #{postnet_forward.1} parent=79 // pred_check
          %p2467 = pneg %p198
        $region82: #{postnet_forward.1} parent=79 // pred_check_branch
          %2469 = sbr.rel (%p2467) target = $region84
        $region83: #{postnet_forward.1} parent=79 // pred_region
          %p2470 = scmp.lt.s32.totalorder %s23, 1
          %s2471 = scalar_select %p2470, %s23, 1
          %s2472 = smul.addr %s2471, 2
          %s2473 = smul.addr %s2472, 8
          %s2474 = scalar_lea.vmem %s7, %s2473
        $region84: #{postnet_forward.1} parent=79 // pred_fallthru
          _
      $region80: #{postnet_forward.1} parent=5 // pred_fallthru
        _
    $region6: #{postnet_forward.1} parent=1 // loop_footer
      %s21 = sadd.s32 1, %s17
    $region7: #{postnet_forward.1} parent=1 // loop_footer_branch
      %16 = sbr.rel target = $region3
    $region8: #{postnet_forward.1} parent=1 // loop_exit
      _
    %2475 = vsyncpa [#allocation3], 1
    %s2476 = scalar_lea.sflag [#allocation3], 1
    %2477 = vsyncpa %s2476, 1
    %2478 = vsyncpa [#allocation5], 1
    %2479 = vsyncpa [#allocation8], 1
    %2480 = vsyncpa [#allocation11], 1

</llo_original>
